<compile_context>
chip_gen: v6e
topology: v6e:2x2x1
jax: 0.10.0
libtpu: 0.0.40
codegen_flags: <defaults>
</compile_context>

<pallas_src>
import jax
import jax.numpy as jnp
from jax.experimental import pallas as pl
from jax.experimental.pallas import tpu as pltpu

C_IN = 192
C_OUT = 192
K = 3
STRIDE = 2
BN_EPS = 1e-3


def _mixed5a_kernel(ee_ref, eo_ref, oe_ref, oo_ref, w_ref, sb_ref, out_ref):
    # ee_ref : (1, TH+1, We, C) bf16  even input rows (overlapping tile), even cols
    # eo_ref : (1, TH+1, Wo, C) bf16  even input rows, odd cols
    # oe_ref : (1, TH,   We, C) bf16  odd  input rows, even cols
    # oo_ref : (1, TH,   Wo, C) bf16  odd  input rows, odd cols
    # w_ref  : (9, C, C)        bf16  conv weight, one (Cin, Cout) slab per 3x3 tap
    # sb_ref : (2, C)           f32   folded-BN scale (row 0) and bias (row 1)
    # out_ref: (1, TH, Wo, 2C)  bf16  fused output: conv+BN+ReLU | maxpool
    TH = oe_ref.shape[1]
    Wo = out_ref.shape[2]
    C = oe_ref.shape[3]
    P = TH * Wo

    eeX = ee_ref[0]          # (TH+1, We, C)
    eoX = eo_ref[0]          # (TH+1, Wo, C)
    oe = oe_ref[0]           # (TH,   We, C)
    oo = oo_ref[0]           # (TH,   Wo, C)

    # The 9 taps of the 3x3 / stride-2 window, (kh, kw) row-major, all static
    # unit-stride slices of the parity planes (already bf16 from HBM).
    taps = (
        eeX[0:TH, 0:Wo],      eoX[0:TH],      eeX[0:TH, 1:Wo + 1],       # kh=0
        oe[:, 0:Wo],          oo,             oe[:, 1:Wo + 1],           # kh=1
        eeX[1:TH + 1, 0:Wo],  eoX[1:TH + 1],  eeX[1:TH + 1, 1:Wo + 1],   # kh=2
    )
    # Wo is a sublane multiple (padded in the wrapper) -> these reshapes and
    # the final output reshape do not cross (8,128) tile boundaries.
    tflat = [t.reshape(P, C) for t in taps]

    acc = jnp.zeros((P, C), jnp.float32)
    for k in range(K * K):                     # static unroll over taps
        acc = acc + jnp.dot(tflat[k], w_ref[k],
                            preferred_element_type=jnp.float32)

    mx = tflat[0]                              # max-pool over the same bf16 taps
    for k in range(1, K * K):
        mx = jnp.maximum(mx, tflat[k])

    conv = jnp.maximum(acc * sb_ref[0:1, :] + sb_ref[1:2, :], 0.0)   # BN + ReLU (f32)
    fused = jnp.concatenate([conv.astype(out_ref.dtype),
                             mx.astype(out_ref.dtype)], axis=-1)     # (P, 2C) bf16
    out_ref[0] = fused.reshape(TH, Wo, 2 * C)


def mixed_5a(x_nchw, w_oihw, bn_gamma, bn_beta, bn_mean, bn_var, *, tile_ho=7):
    N, C, H, W = x_nchw.shape
    assert C == C_IN
    Ho = (H - K) // STRIDE + 1
    Wo = (W - K) // STRIDE + 1
    TH = tile_ho
    nT = -(-Ho // TH)                      # ceil-div row tiles (keep >= 2 for v7x)
    Ho_pad = nT * TH
    Wo_pad = -(-Wo // 8) * 8               # sublane-multiple output width
    We = Wo_pad + 1

    # NCHW -> NHWC and f32 -> bf16 in one fused layout pass.
    x = jnp.transpose(x_nchw, (0, 2, 3, 1)).astype(jnp.bfloat16)

    # Zero-pad rows/cols so every tile has a full input window; padded rows /
    # cols only feed output rows >= Ho / cols >= Wo, which are sliced off.
    h_need = 2 * Ho_pad + 1
    w_need = 2 * Wo_pad + 1
    pad_h = max(0, h_need - H)
    pad_w = max(0, w_need - W)
    if pad_h or pad_w:
        x = jnp.pad(x, ((0, 0), (0, pad_h), (0, pad_w), (0, 0)))

    # Row/col parity planes (~1x input volume, no im2col).
    xe = x[:, 0:2 * Ho_pad + 1:2]               # (N, Ho_pad+1, *, C) even rows
    xo = x[:, 1:2 * Ho_pad:2]                   # (N, Ho_pad,   *, C) odd rows
    xee_f = xe[:, :, 0:2 * Wo_pad + 1:2]        # even rows, even cols (We wide)
    xeo_f = xe[:, :, 1:2 * Wo_pad:2]            # even rows, odd cols  (Wo_pad wide)
    xoe = xo[:, :, 0:2 * Wo_pad + 1:2]          # (N, Ho_pad, We,     C)
    xoo = xo[:, :, 1:2 * Wo_pad:2]              # (N, Ho_pad, Wo_pad, C)

    # Even-row planes as overlapping (TH+1)-row tiles so the kernel needs no
    # boundary-row inputs or in-kernel concat (duplicates only 1/TH of them).
    xee_ov = jnp.stack([xee_f[:, t * TH:(t + 1) * TH + 1] for t in range(nT)],
                       axis=1).reshape(N * nT, TH + 1, We, C_IN)
    xeo_ov = jnp.stack([xeo_f[:, t * TH:(t + 1) * TH + 1] for t in range(nT)],
                       axis=1).reshape(N * nT, TH + 1, Wo_pad, C_IN)

    # torch conv weight (Cout, Cin, kh, kw) -> (kh*kw, Cin, Cout) in bf16.
    w9 = jnp.transpose(w_oihw, (2, 3, 1, 0)).reshape(K * K, C_IN, C_OUT)
    w9 = w9.astype(jnp.bfloat16)

    # Folded BatchNorm affine packed into one (2, C) f32 operand.
    inv_std = jax.lax.rsqrt(bn_var.astype(jnp.float32) + BN_EPS)
    scale = bn_gamma.astype(jnp.float32) * inv_std
    bias = bn_beta.astype(jnp.float32) - bn_mean.astype(jnp.float32) * scale
    sb = jnp.stack([scale, bias]).astype(jnp.float32)

    out = pl.pallas_call(
        _mixed5a_kernel,
        out_shape=jax.ShapeDtypeStruct((N, Ho_pad, Wo_pad, C_OUT + C_IN),
                                       jnp.bfloat16),
        grid_spec=pltpu.PrefetchScalarGridSpec(
            num_scalar_prefetch=0,
            grid=(N, nT),
            in_specs=[
                pl.BlockSpec((1, TH + 1, We, C_IN),
                             lambda n, t: (n * nT + t, 0, 0, 0)),
                pl.BlockSpec((1, TH + 1, Wo_pad, C_IN),
                             lambda n, t: (n * nT + t, 0, 0, 0)),
                pl.BlockSpec((1, TH, We, C_IN), lambda n, t: (n, t, 0, 0)),
                pl.BlockSpec((1, TH, Wo_pad, C_IN), lambda n, t: (n, t, 0, 0)),
                pl.BlockSpec((K * K, C_IN, C_OUT), lambda n, t: (0, 0, 0)),
                pl.BlockSpec((2, C_OUT), lambda n, t: (0, 0)),
            ],
            out_specs=pl.BlockSpec((1, TH, Wo_pad, C_OUT + C_IN),
                                   lambda n, t: (n, t, 0, 0)),
        ),
        # Small double-buffered bf16 blocks: a few MiB total, far under the
        # default scoped VMEM on v5e/v6e and v7x's 64 MiB. Both grid axes are
        # parallel so v7x's two TensorCores split the row tiles even at N=1.
        compiler_params=pltpu.CompilerParams(
            dimension_semantics=("parallel", "parallel")),
    )(xee_ov, xeo_ov, xoe, xoo, w9, sb)

    out = out[:, :Ho, :Wo]                      # drop padded output rows/cols
    # Single exit transpose (conv | pool interleave already fused); the
    # bf16 -> input-dtype cast fuses into the same pass.
    return jnp.transpose(out, (0, 3, 1, 2)).astype(x_nchw.dtype)


def _reference(x, w, gamma, beta, mean, var):
    conv = jax.lax.conv_general_dilated(
        x, w, window_strides=(STRIDE, STRIDE), padding="VALID",
        dimension_numbers=("NCHW", "OIHW", "NCHW"),
        precision=jax.lax.Precision.HIGHEST)
    inv_std = 1.0 / jnp.sqrt(var + BN_EPS)
    bn = (conv - mean[None, :, None, None]) * (gamma * inv_std)[None, :, None, None] \
         + beta[None, :, None, None]
    x0 = jnp.maximum(bn, 0.0)
    x1 = jax.lax.reduce_window(
        x, -jnp.inf, jax.lax.max,
        window_dimensions=(1, 1, K, K), window_strides=(1, 1, STRIDE, STRIDE),
        padding="VALID")
    return jnp.concatenate([x0, x1], axis=1)


if __name__ == "__main__":
    key = jax.random.PRNGKey(0)
    k_x, k_w, k_g, k_b, k_m, k_v = jax.random.split(key, 6)

    N, H, W = 2, 17, 17  # channels fixed at 192 by the module definition
    x = jax.random.normal(k_x, (N, C_IN, H, W), dtype=jnp.float32)

    w = 0.05 * jax.random.normal(k_w, (C_OUT, C_IN, K, K), dtype=jnp.float32)
    bn_gamma = 1.0 + 0.1 * jax.random.normal(k_g, (C_OUT,), dtype=jnp.float32)
    bn_beta = 0.1 * jax.random.normal(k_b, (C_OUT,), dtype=jnp.float32)
    bn_mean = 0.1 * jax.random.normal(k_m, (C_OUT,), dtype=jnp.float32)
    bn_var = 0.5 + jax.random.uniform(k_v, (C_OUT,), dtype=jnp.float32)

    out = jax.jit(mixed_5a)(x, w, bn_gamma, bn_beta, bn_mean, bn_var)
    out = jax.block_until_ready(out)

    ref = _reference(x, w, bn_gamma, bn_beta, bn_mean, bn_var)
    Ho = (H - K) // STRIDE + 1
    Wo = (W - K) // STRIDE + 1
    assert out.shape == (N, C_OUT + C_IN, Ho, Wo)
    # bf16 inputs/weights/outputs (f32 MXU accumulation + f32 BN) -> loosened
    # tolerance vs. the f32 reference.
    assert jnp.allclose(out, ref, rtol=5e-2, atol=5e-2), \
        float(jnp.max(jnp.abs(out - ref)))

    print("KERNEL_OK")
</pallas_src>

<mosaic_0001>
module attributes {stable_mosaic.version = 11 : i64} {
  func.func @_mixed5a_kernel(%arg0: i32, %arg1: i32, %arg2: memref<1x8x9x192xbf16, #tpu.memory_space<vmem>>, %arg3: memref<1x8x8x192xbf16, #tpu.memory_space<vmem>>, %arg4: memref<1x7x9x192xbf16, #tpu.memory_space<vmem>>, %arg5: memref<1x7x8x192xbf16, #tpu.memory_space<vmem>>, %arg6: memref<9x192x192xbf16, #tpu.memory_space<vmem>>, %arg7: memref<2x192xf32, #tpu.memory_space<vmem>>, %arg8: memref<1x7x8x384xbf16, #tpu.memory_space<vmem>>) attributes {dimension_semantics = [#tpu.dimension_semantics<parallel>, #tpu.dimension_semantics<parallel>], iteration_bounds = array<i64: 2, 2>, scalar_prefetch = 0 : i64, scratch_operands = 0 : i64, tpu.core_type = #tpu.core_type<tc>, window_params = [{transform_indices = @transform_0, window_bounds = array<i64: 1, 8, 9, 192>}, {transform_indices = @transform_1, window_bounds = array<i64: 1, 8, 8, 192>}, {transform_indices = @transform_2, window_bounds = array<i64: 1, 7, 9, 192>}, {transform_indices = @transform_3, window_bounds = array<i64: 1, 7, 8, 192>}, {pipeline_mode = #tpu.pipeline_mode<synchronous>, transform_indices = @transform_4, window_bounds = array<i64: 9, 192, 192>}, {pipeline_mode = #tpu.pipeline_mode<synchronous>, transform_indices = @transform_5, window_bounds = array<i64: 2, 192>}, {transform_indices = @transform_6, window_bounds = array<i64: 1, 7, 8, 384>}]} {
    %c0 = arith.constant 0 : index
    %c0_0 = arith.constant 0 : index
    %c0_1 = arith.constant 0 : index
    %c0_2 = arith.constant 0 : index
    %0 = vector.load %arg2[%c0, %c0_0, %c0_1, %c0_2] : memref<1x8x9x192xbf16, #tpu.memory_space<vmem>>, vector<1x8x9x192xbf16>
    %1 = vector.shape_cast %0 : vector<1x8x9x192xbf16> to vector<8x9x192xbf16>
    %c0_3 = arith.constant 0 : index
    %c0_4 = arith.constant 0 : index
    %c0_5 = arith.constant 0 : index
    %c0_6 = arith.constant 0 : index
    %2 = vector.load %arg3[%c0_3, %c0_4, %c0_5, %c0_6] : memref<1x8x8x192xbf16, #tpu.memory_space<vmem>>, vector<1x8x8x192xbf16>
    %3 = vector.shape_cast %2 : vector<1x8x8x192xbf16> to vector<8x8x192xbf16>
    %c0_7 = arith.constant 0 : index
    %c0_8 = arith.constant 0 : index
    %c0_9 = arith.constant 0 : index
    %c0_10 = arith.constant 0 : index
    %4 = vector.load %arg4[%c0_7, %c0_8, %c0_9, %c0_10] : memref<1x7x9x192xbf16, #tpu.memory_space<vmem>>, vector<1x7x9x192xbf16>
    %5 = vector.shape_cast %4 : vector<1x7x9x192xbf16> to vector<7x9x192xbf16>
    %c0_11 = arith.constant 0 : index
    %c0_12 = arith.constant 0 : index
    %c0_13 = arith.constant 0 : index
    %c0_14 = arith.constant 0 : index
    %6 = vector.load %arg5[%c0_11, %c0_12, %c0_13, %c0_14] : memref<1x7x8x192xbf16, #tpu.memory_space<vmem>>, vector<1x7x8x192xbf16>
    %7 = vector.shape_cast %6 : vector<1x7x8x192xbf16> to vector<7x8x192xbf16>
    %8 = vector.extract_strided_slice %1 {offsets = [0, 0, 0], sizes = [7, 8, 192], strides = [1, 1, 1]} : vector<8x9x192xbf16> to vector<7x8x192xbf16>
    %9 = vector.extract_strided_slice %3 {offsets = [0, 0, 0], sizes = [7, 8, 192], strides = [1, 1, 1]} : vector<8x8x192xbf16> to vector<7x8x192xbf16>
    %10 = vector.extract_strided_slice %1 {offsets = [0, 1, 0], sizes = [7, 8, 192], strides = [1, 1, 1]} : vector<8x9x192xbf16> to vector<7x8x192xbf16>
    %11 = vector.extract_strided_slice %5 {offsets = [0, 0, 0], sizes = [7, 8, 192], strides = [1, 1, 1]} : vector<7x9x192xbf16> to vector<7x8x192xbf16>
    %12 = vector.extract_strided_slice %5 {offsets = [0, 1, 0], sizes = [7, 8, 192], strides = [1, 1, 1]} : vector<7x9x192xbf16> to vector<7x8x192xbf16>
    %13 = vector.extract_strided_slice %1 {offsets = [1, 0, 0], sizes = [7, 8, 192], strides = [1, 1, 1]} : vector<8x9x192xbf16> to vector<7x8x192xbf16>
    %14 = vector.extract_strided_slice %3 {offsets = [1, 0, 0], sizes = [7, 8, 192], strides = [1, 1, 1]} : vector<8x8x192xbf16> to vector<7x8x192xbf16>
    %15 = vector.extract_strided_slice %1 {offsets = [1, 1, 0], sizes = [7, 8, 192], strides = [1, 1, 1]} : vector<8x9x192xbf16> to vector<7x8x192xbf16>
    %16 = vector.shape_cast %8 : vector<7x8x192xbf16> to vector<56x192xbf16>
    %17 = vector.shape_cast %9 : vector<7x8x192xbf16> to vector<56x192xbf16>
    %18 = vector.shape_cast %10 : vector<7x8x192xbf16> to vector<56x192xbf16>
    %19 = vector.shape_cast %11 : vector<7x8x192xbf16> to vector<56x192xbf16>
    %20 = vector.shape_cast %7 : vector<7x8x192xbf16> to vector<56x192xbf16>
    %21 = vector.shape_cast %12 : vector<7x8x192xbf16> to vector<56x192xbf16>
    %22 = vector.shape_cast %13 : vector<7x8x192xbf16> to vector<56x192xbf16>
    %23 = vector.shape_cast %14 : vector<7x8x192xbf16> to vector<56x192xbf16>
    %24 = vector.shape_cast %15 : vector<7x8x192xbf16> to vector<56x192xbf16>
    %cst = arith.constant 0.000000e+00 : f32
    %25 = vector.broadcast %cst : f32 to vector<56x192xf32>
    %c0_15 = arith.constant 0 : index
    %c0_16 = arith.constant 0 : index
    %c0_17 = arith.constant 0 : index
    %26 = vector.load %arg6[%c0_15, %c0_16, %c0_17] : memref<9x192x192xbf16, #tpu.memory_space<vmem>>, vector<1x192x192xbf16>
    %27 = vector.shape_cast %26 : vector<1x192x192xbf16> to vector<192x192xbf16>
    %cst_18 = arith.constant dense<0.000000e+00> : vector<56x192xf32>
    %28 = tpu.matmul %16, %27, %cst_18 {dimension_numbers = #tpu.dot_dimension_numbers<[1], [0], [0], [1], [0, 0, 1, 1], [], []>} : vector<56x192xbf16>, vector<192x192xbf16>, vector<56x192xf32> -> vector<56x192xf32>
    %29 = arith.addf %25, %28 : vector<56x192xf32>
    %c1 = arith.constant 1 : index
    %c0_19 = arith.constant 0 : index
    %c0_20 = arith.constant 0 : index
    %30 = vector.load %arg6[%c1, %c0_19, %c0_20] : memref<9x192x192xbf16, #tpu.memory_space<vmem>>, vector<1x192x192xbf16>
    %31 = vector.shape_cast %30 : vector<1x192x192xbf16> to vector<192x192xbf16>
    %cst_21 = arith.constant dense<0.000000e+00> : vector<56x192xf32>
    %32 = tpu.matmul %17, %31, %cst_21 {dimension_numbers = #tpu.dot_dimension_numbers<[1], [0], [0], [1], [0, 0, 1, 1], [], []>} : vector<56x192xbf16>, vector<192x192xbf16>, vector<56x192xf32> -> vector<56x192xf32>
    %33 = arith.addf %29, %32 : vector<56x192xf32>
    %c2 = arith.constant 2 : index
    %c0_22 = arith.constant 0 : index
    %c0_23 = arith.constant 0 : index
    %34 = vector.load %arg6[%c2, %c0_22, %c0_23] : memref<9x192x192xbf16, #tpu.memory_space<vmem>>, vector<1x192x192xbf16>
    %35 = vector.shape_cast %34 : vector<1x192x192xbf16> to vector<192x192xbf16>
    %cst_24 = arith.constant dense<0.000000e+00> : vector<56x192xf32>
    %36 = tpu.matmul %18, %35, %cst_24 {dimension_numbers = #tpu.dot_dimension_numbers<[1], [0], [0], [1], [0, 0, 1, 1], [], []>} : vector<56x192xbf16>, vector<192x192xbf16>, vector<56x192xf32> -> vector<56x192xf32>
    %37 = arith.addf %33, %36 : vector<56x192xf32>
    %c3 = arith.constant 3 : index
    %c0_25 = arith.constant 0 : index
    %c0_26 = arith.constant 0 : index
    %38 = vector.load %arg6[%c3, %c0_25, %c0_26] : memref<9x192x192xbf16, #tpu.memory_space<vmem>>, vector<1x192x192xbf16>
    %39 = vector.shape_cast %38 : vector<1x192x192xbf16> to vector<192x192xbf16>
    %cst_27 = arith.constant dense<0.000000e+00> : vector<56x192xf32>
    %40 = tpu.matmul %19, %39, %cst_27 {dimension_numbers = #tpu.dot_dimension_numbers<[1], [0], [0], [1], [0, 0, 1, 1], [], []>} : vector<56x192xbf16>, vector<192x192xbf16>, vector<56x192xf32> -> vector<56x192xf32>
    %41 = arith.addf %37, %40 : vector<56x192xf32>
    %c4 = arith.constant 4 : index
    %c0_28 = arith.constant 0 : index
    %c0_29 = arith.constant 0 : index
    %42 = vector.load %arg6[%c4, %c0_28, %c0_29] : memref<9x192x192xbf16, #tpu.memory_space<vmem>>, vector<1x192x192xbf16>
    %43 = vector.shape_cast %42 : vector<1x192x192xbf16> to vector<192x192xbf16>
    %cst_30 = arith.constant dense<0.000000e+00> : vector<56x192xf32>
    %44 = tpu.matmul %20, %43, %cst_30 {dimension_numbers = #tpu.dot_dimension_numbers<[1], [0], [0], [1], [0, 0, 1, 1], [], []>} : vector<56x192xbf16>, vector<192x192xbf16>, vector<56x192xf32> -> vector<56x192xf32>
    %45 = arith.addf %41, %44 : vector<56x192xf32>
    %c5 = arith.constant 5 : index
    %c0_31 = arith.constant 0 : index
    %c0_32 = arith.constant 0 : index
    %46 = vector.load %arg6[%c5, %c0_31, %c0_32] : memref<9x192x192xbf16, #tpu.memory_space<vmem>>, vector<1x192x192xbf16>
    %47 = vector.shape_cast %46 : vector<1x192x192xbf16> to vector<192x192xbf16>
    %cst_33 = arith.constant dense<0.000000e+00> : vector<56x192xf32>
    %48 = tpu.matmul %21, %47, %cst_33 {dimension_numbers = #tpu.dot_dimension_numbers<[1], [0], [0], [1], [0, 0, 1, 1], [], []>} : vector<56x192xbf16>, vector<192x192xbf16>, vector<56x192xf32> -> vector<56x192xf32>
    %49 = arith.addf %45, %48 : vector<56x192xf32>
    %c6 = arith.constant 6 : index
    %c0_34 = arith.constant 0 : index
    %c0_35 = arith.constant 0 : index
    %50 = vector.load %arg6[%c6, %c0_34, %c0_35] : memref<9x192x192xbf16, #tpu.memory_space<vmem>>, vector<1x192x192xbf16>
    %51 = vector.shape_cast %50 : vector<1x192x192xbf16> to vector<192x192xbf16>
    %cst_36 = arith.constant dense<0.000000e+00> : vector<56x192xf32>
    %52 = tpu.matmul %22, %51, %cst_36 {dimension_numbers = #tpu.dot_dimension_numbers<[1], [0], [0], [1], [0, 0, 1, 1], [], []>} : vector<56x192xbf16>, vector<192x192xbf16>, vector<56x192xf32> -> vector<56x192xf32>
    %53 = arith.addf %49, %52 : vector<56x192xf32>
    %c7 = arith.constant 7 : index
    %c0_37 = arith.constant 0 : index
    %c0_38 = arith.constant 0 : index
    %54 = vector.load %arg6[%c7, %c0_37, %c0_38] : memref<9x192x192xbf16, #tpu.memory_space<vmem>>, vector<1x192x192xbf16>
    %55 = vector.shape_cast %54 : vector<1x192x192xbf16> to vector<192x192xbf16>
    %cst_39 = arith.constant dense<0.000000e+00> : vector<56x192xf32>
    %56 = tpu.matmul %23, %55, %cst_39 {dimension_numbers = #tpu.dot_dimension_numbers<[1], [0], [0], [1], [0, 0, 1, 1], [], []>} : vector<56x192xbf16>, vector<192x192xbf16>, vector<56x192xf32> -> vector<56x192xf32>
    %57 = arith.addf %53, %56 : vector<56x192xf32>
    %c8 = arith.constant 8 : index
    %c0_40 = arith.constant 0 : index
    %c0_41 = arith.constant 0 : index
    %58 = vector.load %arg6[%c8, %c0_40, %c0_41] : memref<9x192x192xbf16, #tpu.memory_space<vmem>>, vector<1x192x192xbf16>
    %59 = vector.shape_cast %58 : vector<1x192x192xbf16> to vector<192x192xbf16>
    %cst_42 = arith.constant dense<0.000000e+00> : vector<56x192xf32>
    %60 = tpu.matmul %24, %59, %cst_42 {dimension_numbers = #tpu.dot_dimension_numbers<[1], [0], [0], [1], [0, 0, 1, 1], [], []>} : vector<56x192xbf16>, vector<192x192xbf16>, vector<56x192xf32> -> vector<56x192xf32>
    %61 = arith.addf %57, %60 : vector<56x192xf32>
    %62 = arith.maximumf %16, %17 : vector<56x192xbf16>
    %63 = arith.maximumf %62, %18 : vector<56x192xbf16>
    %64 = arith.maximumf %63, %19 : vector<56x192xbf16>
    %65 = arith.maximumf %64, %20 : vector<56x192xbf16>
    %66 = arith.maximumf %65, %21 : vector<56x192xbf16>
    %67 = arith.maximumf %66, %22 : vector<56x192xbf16>
    %68 = arith.maximumf %67, %23 : vector<56x192xbf16>
    %69 = arith.maximumf %68, %24 : vector<56x192xbf16>
    %c0_43 = arith.constant 0 : index
    %c0_44 = arith.constant 0 : index
    %70 = vector.load %arg7[%c0_43, %c0_44] : memref<2x192xf32, #tpu.memory_space<vmem>>, vector<1x192xf32>
    %71 = vector.broadcast %70 : vector<1x192xf32> to vector<56x192xf32>
    %72 = arith.mulf %61, %71 : vector<56x192xf32>
    %c1_45 = arith.constant 1 : index
    %c0_46 = arith.constant 0 : index
    %73 = vector.load %arg7[%c1_45, %c0_46] : memref<2x192xf32, #tpu.memory_space<vmem>>, vector<1x192xf32>
    %74 = vector.broadcast %73 : vector<1x192xf32> to vector<56x192xf32>
    %75 = arith.addf %72, %74 : vector<56x192xf32>
    %cst_47 = arith.constant 0.000000e+00 : f32
    %76 = vector.broadcast %cst_47 : f32 to vector<56x192xf32>
    %77 = arith.maximumf %75, %76 : vector<56x192xf32>
    %78 = arith.truncf %77 : vector<56x192xf32> to vector<56x192xbf16>
    %79 = tpu.concatenate %78, %69 in 1 : vector<56x192xbf16>, vector<56x192xbf16> -> vector<56x384xbf16>
    %80 = vector.shape_cast %79 : vector<56x384xbf16> to vector<7x8x384xbf16>
    %c0_48 = arith.constant 0 : index
    %c0_49 = arith.constant 0 : index
    %c0_50 = arith.constant 0 : index
    %c0_51 = arith.constant 0 : index
    %81 = vector.load %arg8[%c0_48, %c0_49, %c0_50, %c0_51] : memref<1x7x8x384xbf16, #tpu.memory_space<vmem>>, vector<1x7x8x384xbf16>
    %82 = vector.shape_cast %81 : vector<1x7x8x384xbf16> to vector<7x8x384xbf16>
    %83 = vector.shape_cast %80 : vector<7x8x384xbf16> to vector<1x7x8x384xbf16>
    tpu.vector_store %arg8[%c0_48, %c0_49, %c0_50, %c0_51], %83 {strides = array<i32>} : memref<1x7x8x384xbf16, #tpu.memory_space<vmem>>, vector<1x7x8x384xbf16>,
    return
  }
  func.func @transform_0(%arg0: i32, %arg1: i32) -> (i32, i32, i32, i32) {
    %c2_i32 = arith.constant 2 : i32
    %0 = arith.muli %arg0, %c2_i32 : i32
    %1 = arith.addi %0, %arg1 : i32
    %c0_i32 = arith.constant 0 : i32
    %c0_i32_0 = arith.constant 0 : i32
    %c0_i32_1 = arith.constant 0 : i32
    %c0_i32_2 = arith.constant 0 : i32
    return %1, %c0_i32, %c0_i32_0, %c0_i32_1 : i32, i32, i32, i32
  }
  func.func @transform_1(%arg0: i32, %arg1: i32) -> (i32, i32, i32, i32) {
    %c2_i32 = arith.constant 2 : i32
    %0 = arith.muli %arg0, %c2_i32 : i32
    %1 = arith.addi %0, %arg1 : i32
    %c0_i32 = arith.constant 0 : i32
    %c0_i32_0 = arith.constant 0 : i32
    %c0_i32_1 = arith.constant 0 : i32
    %c0_i32_2 = arith.constant 0 : i32
    return %1, %c0_i32, %c0_i32_0, %c0_i32_1 : i32, i32, i32, i32
  }
  func.func @transform_2(%arg0: i32, %arg1: i32) -> (i32, i32, i32, i32) {
    %c0_i32 = arith.constant 0 : i32
    %c0_i32_0 = arith.constant 0 : i32
    %c0_i32_1 = arith.constant 0 : i32
    return %arg0, %arg1, %c0_i32, %c0_i32_0 : i32, i32, i32, i32
  }
  func.func @transform_3(%arg0: i32, %arg1: i32) -> (i32, i32, i32, i32) {
    %c0_i32 = arith.constant 0 : i32
    %c0_i32_0 = arith.constant 0 : i32
    %c0_i32_1 = arith.constant 0 : i32
    return %arg0, %arg1, %c0_i32, %c0_i32_0 : i32, i32, i32, i32
  }
  func.func @transform_4(%arg0: i32, %arg1: i32) -> (i32, i32, i32) {
    %c0_i32 = arith.constant 0 : i32
    %c0_i32_0 = arith.constant 0 : i32
    %c0_i32_1 = arith.constant 0 : i32
    %c0_i32_2 = arith.constant 0 : i32
    return %c0_i32, %c0_i32_0, %c0_i32_1 : i32, i32, i32
  }
  func.func @transform_5(%arg0: i32, %arg1: i32) -> (i32, i32) {
    %c0_i32 = arith.constant 0 : i32
    %c0_i32_0 = arith.constant 0 : i32
    %c0_i32_1 = arith.constant 0 : i32
    return %c0_i32, %c0_i32_0 : i32, i32
  }
  func.func @transform_6(%arg0: i32, %arg1: i32) -> (i32, i32, i32, i32) {
    %c0_i32 = arith.constant 0 : i32
    %c0_i32_0 = arith.constant 0 : i32
    %c0_i32_1 = arith.constant 0 : i32
    return %arg0, %arg1, %c0_i32, %c0_i32_0 : i32, i32, i32, i32
  }
}

</mosaic_0001>

<llo_original>
// kernel: mixed_5a.1
$region0: #{mixed_5a.1}
  #allocation0 [shape = 'u32[]', space=smem, size = 0x4, offset = 0x4, fixed_abs, tag = 'smem constant byte address 0x4 - core index']
  #allocation1 [shape = 'u32[144,128]{1,0:T(1,128)}', space=vmem, size = 0x12000, scoped, tag = 'internal scratch']
  %s0 = inlined_call_operand.vmem [shape: bf16[4,8,9,192], index: 0, kind: input, shape index: {}]
  %s1 = inlined_call_operand.vmem [shape: bf16[4,8,8,192], index: 1, kind: input, shape index: {}]
  %s2 = inlined_call_operand.vmem [shape: bf16[2,14,9,192], index: 2, kind: input, shape index: {}]
  %s3 = inlined_call_operand.vmem [shape: bf16[2,14,8,192], index: 3, kind: input, shape index: {}]
  %s4 = inlined_call_operand.vmem [shape: bf16[9,192,192], index: 4, kind: input, shape index: {}]
  %s5 = inlined_call_operand.vmem [shape: f32[2,192], index: 5, kind: input, shape index: {}]
  %s6 = inlined_call_operand.vmem [shape: bf16[2,14,8,384], index: 6, kind: output, shape index: {}]
  %s7 = sld [smem:[#allocation0]]
  $region57: #{mixed_5a.1} parent=0
    _
  %s9 = ssub.s32 1, %s7
  %s10 = scalar_select 0, %s9, %s7
  loop: start=0, step=1, limit=6
  $region2: #{mixed_5a.1} parent=0 // loop_pre_header
    _
  $region3: #{mixed_5a.1} parent=0 // loop_header
    %s12 = sphi 0, %s16
    %p13 = scmp.ge.s32.totalorder %s12, 6
    %s19 = sphi 0, %s31
    %s20 = sphi 0, %s27
    %s21 = sphi 0, %s19
    %s22 = sphi 0, %s20
    %s23 = sphi 0, %s21
    %s24 = sphi 0, %s22
    %s38 = sphi 0, %s40
    %s41 = sphi 0, %s38
    %s42 = sphi 0, %s41
    %s58 = sphi 0, %s42
    %s68 = sphi 0, %s70
    %s71 = sphi 0, %s68
    %s72 = sphi 0, %s71
    %s88 = sphi 0, %s72
    %s96 = sphi 0, %s98
    %s99 = sphi 0, %s96
    %s100 = sphi 0, %s99
    %s116 = sphi 0, %s100
    %s124 = sphi 0, %s126
    %s127 = sphi 0, %s124
    %s128 = sphi 0, %s127
    %s144 = sphi 0, %s128
    %s148 = sphi 0, %s148
    %s150 = sphi 0, %s148
    %s151 = sphi 0, %s150
    %s165 = sphi 0, %s151
    %s169 = sphi 0, %s169
    %s171 = sphi 0, %s169
    %s172 = sphi 0, %s171
    %s186 = sphi 0, %s172
    %s194 = sphi 0, %s196
    %s197 = sphi 0, %s194
    %s198 = sphi 0, %s197
    %s214 = sphi 0, %s198
  $region4: #{mixed_5a.1} parent=0 // loop_header_branch
    %15 = sbr.rel (%p13) target = $region8
  $region5: #{mixed_5a.1} parent=0 // loop_body
    %s17 = ssub.s32 %s12, 1
    %s18 = ssub.s32 %s12, 2
    %s25 = sadd.s32 1, %s20
    %p26 = scmp.ge.s32.totalorder %s25, 2
    %s27 = scalar_select %p26, 0, %s25
    %s28 = sadd.s32 1, %s19
    %s29 = scalar_select %p26, %s28, %s19
    %p30 = scmp.ge.s32.totalorder %s29, 2
    %s31 = scalar_select %p30, 0, %s29
    %s32 = smul.u32 %s19, 2
    %s33 = sadd.s32 %s32, %s20
    %s34 = smul.u32 %s31, 2
    %s35 = sadd.s32 %s34, %s27
    %s36 = ssub.s32 %s33, %s35
    %p37 = scmp.eq.s32.totalorder %s36, 0
    %s39 = sadd.s32 %s38, 1
    %s40 = scalar_select %p37, %s38, %s39
    %p43 = pneg %p37
    %p44 = scmp.eq.s32.totalorder %s12, 3
    %p45 = por %p43, %p44
    %p46 = scmp.ne.s32.totalorder %s38, %s41
    %p47 = scmp.eq.s32.totalorder %s12, 0
    %p48 = por %p46, %p47
    %p49 = scmp.ne.s32.totalorder %s38, %s41
    %p50 = scmp.eq.s32.totalorder %s17, 3
    %p51 = por %p49, %p50
    %p52 = scmp.ne.s32.totalorder %s41, %s42
    %p53 = scmp.eq.s32.totalorder %s17, 0
    %p54 = por %p52, %p53
    %p55 = scmp.ne.s32.totalorder %s41, %s42
    %p56 = scmp.eq.s32.totalorder %s18, 3
    %p57 = por %p55, %p56
    %p59 = scmp.ne.s32.totalorder %s42, %s58
    %p60 = scmp.eq.s32.totalorder %s18, 0
    %p61 = por %p59, %p60
    %s62 = smul.u32 %s19, 2
    %s63 = sadd.s32 %s62, %s20
    %s64 = smul.u32 %s31, 2
    %s65 = sadd.s32 %s64, %s27
    %s66 = ssub.s32 %s63, %s65
    %p67 = scmp.eq.s32.totalorder %s66, 0
    %s69 = sadd.s32 %s68, 1
    %s70 = scalar_select %p67, %s68, %s69
    %p73 = pneg %p67
    %p74 = scmp.eq.s32.totalorder %s12, 3
    %p75 = por %p73, %p74
    %p76 = scmp.ne.s32.totalorder %s68, %s71
    %p77 = scmp.eq.s32.totalorder %s12, 0
    %p78 = por %p76, %p77
    %p79 = scmp.ne.s32.totalorder %s68, %s71
    %p80 = scmp.eq.s32.totalorder %s17, 3
    %p81 = por %p79, %p80
    %p82 = scmp.ne.s32.totalorder %s71, %s72
    %p83 = scmp.eq.s32.totalorder %s17, 0
    %p84 = por %p82, %p83
    %p85 = scmp.ne.s32.totalorder %s71, %s72
    %p86 = scmp.eq.s32.totalorder %s18, 3
    %p87 = por %p85, %p86
    %p89 = scmp.ne.s32.totalorder %s72, %s88
    %p90 = scmp.eq.s32.totalorder %s18, 0
    %p91 = por %p89, %p90
    %s92 = ssub.s32 %s19, %s31
    %s93 = ssub.s32 %s20, %s27
    %s94 = sor.u32 %s92, %s93
    %p95 = scmp.eq.s32.totalorder %s94, 0
    %s97 = sadd.s32 %s96, 1
    %s98 = scalar_select %p95, %s96, %s97
    %p101 = pneg %p95
    %p102 = scmp.eq.s32.totalorder %s12, 3
    %p103 = por %p101, %p102
    %p104 = scmp.ne.s32.totalorder %s96, %s99
    %p105 = scmp.eq.s32.totalorder %s12, 0
    %p106 = por %p104, %p105
    %p107 = scmp.ne.s32.totalorder %s96, %s99
    %p108 = scmp.eq.s32.totalorder %s17, 3
    %p109 = por %p107, %p108
    %p110 = scmp.ne.s32.totalorder %s99, %s100
    %p111 = scmp.eq.s32.totalorder %s17, 0
    %p112 = por %p110, %p111
    %p113 = scmp.ne.s32.totalorder %s99, %s100
    %p114 = scmp.eq.s32.totalorder %s18, 3
    %p115 = por %p113, %p114
    %p117 = scmp.ne.s32.totalorder %s100, %s116
    %p118 = scmp.eq.s32.totalorder %s18, 0
    %p119 = por %p117, %p118
    %s120 = ssub.s32 %s19, %s31
    %s121 = ssub.s32 %s20, %s27
    %s122 = sor.u32 %s120, %s121
    %p123 = scmp.eq.s32.totalorder %s122, 0
    %s125 = sadd.s32 %s124, 1
    %s126 = scalar_select %p123, %s124, %s125
    %p129 = pneg %p123
    %p130 = scmp.eq.s32.totalorder %s12, 3
    %p131 = por %p129, %p130
    %p132 = scmp.ne.s32.totalorder %s124, %s127
    %p133 = scmp.eq.s32.totalorder %s12, 0
    %p134 = por %p132, %p133
    %p135 = scmp.ne.s32.totalorder %s124, %s127
    %p136 = scmp.eq.s32.totalorder %s17, 3
    %p137 = por %p135, %p136
    %p138 = scmp.ne.s32.totalorder %s127, %s128
    %p139 = scmp.eq.s32.totalorder %s17, 0
    %p140 = por %p138, %p139
    %p141 = scmp.ne.s32.totalorder %s127, %s128
    %p142 = scmp.eq.s32.totalorder %s18, 3
    %p143 = por %p141, %p142
    %p145 = scmp.ne.s32.totalorder %s128, %s144
    %p146 = scmp.eq.s32.totalorder %s18, 0
    %p147 = por %p145, %p146
    %s149 = sadd.s32 %s148, 1
    %p152 = scmp.eq.s32.totalorder %s12, 3
    %p153 = scmp.ne.s32.totalorder %s148, %s150
    %p154 = scmp.eq.s32.totalorder %s12, 0
    %p155 = por %p153, %p154
    %p156 = scmp.ne.s32.totalorder %s148, %s150
    %p157 = scmp.eq.s32.totalorder %s17, 3
    %p158 = por %p156, %p157
    %p159 = scmp.ne.s32.totalorder %s150, %s151
    %p160 = scmp.eq.s32.totalorder %s17, 0
    %p161 = por %p159, %p160
    %p162 = scmp.ne.s32.totalorder %s150, %s151
    %p163 = scmp.eq.s32.totalorder %s18, 3
    %p164 = por %p162, %p163
    %p166 = scmp.ne.s32.totalorder %s151, %s165
    %p167 = scmp.eq.s32.totalorder %s18, 0
    %p168 = por %p166, %p167
    %s170 = sadd.s32 %s169, 1
    %p173 = scmp.eq.s32.totalorder %s12, 3
    %p174 = scmp.ne.s32.totalorder %s169, %s171
    %p175 = scmp.eq.s32.totalorder %s12, 0
    %p176 = por %p174, %p175
    %p177 = scmp.ne.s32.totalorder %s169, %s171
    %p178 = scmp.eq.s32.totalorder %s17, 3
    %p179 = por %p177, %p178
    %p180 = scmp.ne.s32.totalorder %s171, %s172
    %p181 = scmp.eq.s32.totalorder %s17, 0
    %p182 = por %p180, %p181
    %p183 = scmp.ne.s32.totalorder %s171, %s172
    %p184 = scmp.eq.s32.totalorder %s18, 3
    %p185 = por %p183, %p184
    %p187 = scmp.ne.s32.totalorder %s172, %s186
    %p188 = scmp.eq.s32.totalorder %s18, 0
    %p189 = por %p187, %p188
    %s190 = ssub.s32 %s19, %s31
    %s191 = ssub.s32 %s20, %s27
    %s192 = sor.u32 %s190, %s191
    %p193 = scmp.eq.s32.totalorder %s192, 0
    %s195 = sadd.s32 %s194, 1
    %s196 = scalar_select %p193, %s194, %s195
    %p199 = pneg %p193
    %p200 = scmp.eq.s32.totalorder %s12, 3
    %p201 = por %p199, %p200
    %p202 = scmp.ne.s32.totalorder %s194, %s197
    %p203 = scmp.eq.s32.totalorder %s12, 0
    %p204 = por %p202, %p203
    %p205 = scmp.ne.s32.totalorder %s194, %s197
    %p206 = scmp.eq.s32.totalorder %s17, 3
    %p207 = por %p205, %p206
    %p208 = scmp.ne.s32.totalorder %s197, %s198
    %p209 = scmp.eq.s32.totalorder %s17, 0
    %p210 = por %p208, %p209
    %p211 = scmp.ne.s32.totalorder %s197, %s198
    %p212 = scmp.eq.s32.totalorder %s18, 3
    %p213 = por %p211, %p212
    %p215 = scmp.ne.s32.totalorder %s198, %s214
    %p216 = scmp.eq.s32.totalorder %s18, 0
    %p217 = por %p215, %p216
    %p218 = scmp.le.s32.totalorder 1, %s12
    %p219 = scmp.lt.s32.totalorder %s12, 5
    %p220 = pnand %p218, %p219
    %p221 = pneg %p220
    // Predicated region
    $region9: #{mixed_5a.1} parent=5 // pred_check
      _
    $region10: #{mixed_5a.1} parent=5 // pred_check_branch
      %223 = sbr.rel (%p220) target = $region12
    $region11: #{mixed_5a.1} parent=5 // pred_region
      %s224 = ssub.s32 %s12, 1
      // Predicated region
      $region13: #{mixed_5a.1} parent=11 // pred_check
        %p225 = pneg %p161
      $region14: #{mixed_5a.1} parent=11 // pred_check_branch
        %227 = sbr.rel (%p225) target = $region16
      $region15: #{mixed_5a.1} parent=11 // pred_region
        _
      $region16: #{mixed_5a.1} parent=11 // pred_fallthru
        _
      // Predicated region
      $region17: #{mixed_5a.1} parent=11 // pred_check
        %p228 = pneg %p182
      $region18: #{mixed_5a.1} parent=11 // pred_check_branch
        %230 = sbr.rel (%p228) target = $region20
      $region19: #{mixed_5a.1} parent=11 // pred_region
        _
      $region20: #{mixed_5a.1} parent=11 // pred_fallthru
        _
    $region12: #{mixed_5a.1} parent=5 // pred_fallthru
      _
    %p231 = scmp.lt.s32.totalorder %s12, 4
    // Predicated region
    $region21: #{mixed_5a.1} parent=5 // pred_check
      %p232 = pneg %p231
    $region22: #{mixed_5a.1} parent=5 // pred_check_branch
      %234 = sbr.rel (%p232) target = $region24
    $region23: #{mixed_5a.1} parent=5 // pred_region
      // Predicated region
      $region25: #{mixed_5a.1} parent=23 // pred_check
        %p235 = pneg %p48
      $region26: #{mixed_5a.1} parent=23 // pred_check_branch
        %237 = sbr.rel (%p235) target = $region28
      $region27: #{mixed_5a.1} parent=23 // pred_region
        %s238 = smul.u32 %s19, 2
        %s239 = sadd.s32 %s238, %s20
        %p240 = scmp.lt.s32.totalorder %s239, 3
        %s241 = scalar_select %p240, %s239, 3
        %s242 = smul.addr %s241, 32
        %s243 = smul.addr %s242, 4
        %s244 = scalar_lea.vmem %s0, %s243
        %s245 = smul.u32 %s19, 2
        %s246 = sadd.s32 %s245, %s20
      $region28: #{mixed_5a.1} parent=23 // pred_fallthru
        _
      // Predicated region
      $region29: #{mixed_5a.1} parent=23 // pred_check
        %p247 = pneg %p78
      $region30: #{mixed_5a.1} parent=23 // pred_check_branch
        %249 = sbr.rel (%p247) target = $region32
      $region31: #{mixed_5a.1} parent=23 // pred_region
        %s250 = smul.u32 %s19, 2
        %s251 = sadd.s32 %s250, %s20
        %p252 = scmp.lt.s32.totalorder %s251, 3
        %s253 = scalar_select %p252, %s251, 3
        %s254 = smul.addr %s253, 16
        %s255 = smul.addr %s254, 4
        %s256 = scalar_lea.vmem %s1, %s255
        %s257 = smul.u32 %s19, 2
        %s258 = sadd.s32 %s257, %s20
      $region32: #{mixed_5a.1} parent=23 // pred_fallthru
        _
      // Predicated region
      $region33: #{mixed_5a.1} parent=23 // pred_check
        %p259 = pneg %p106
      $region34: #{mixed_5a.1} parent=23 // pred_check_branch
        %261 = sbr.rel (%p259) target = $region36
      $region35: #{mixed_5a.1} parent=23 // pred_region
        %s262 = smul.u32 7, %s20
        %p263 = scmp.lt.s32.totalorder %s19, 1
        %s264 = scalar_select %p263, %s19, 1
        %p265 = scmp.lt.s32.totalorder %s262, 13
        %s266 = scalar_select %p265, %s262, 13
        %s267 = smul.addr %s266, 4
        %s268 = smul.addr %s264, 56
        %s269 = sadd.s32 %s267, %s268
        %s270 = smul.addr %s269, 4
        %s271 = scalar_lea.vmem %s2, %s270
        %s272 = smul.u32 7, %s20
      $region36: #{mixed_5a.1} parent=23 // pred_fallthru
        _
      // Predicated region
      $region37: #{mixed_5a.1} parent=23 // pred_check
        %p273 = pneg %p134
      $region38: #{mixed_5a.1} parent=23 // pred_check_branch
        %275 = sbr.rel (%p273) target = $region40
      $region39: #{mixed_5a.1} parent=23 // pred_region
        %s276 = smul.u32 7, %s20
        %p277 = scmp.lt.s32.totalorder %s19, 1
        %s278 = scalar_select %p277, %s19, 1
        %p279 = scmp.lt.s32.totalorder %s276, 13
        %s280 = scalar_select %p279, %s276, 13
        %s281 = smul.addr %s280, 2
        %s282 = smul.addr %s278, 28
        %s283 = sadd.s32 %s281, %s282
        %s284 = smul.addr %s283, 4
        %s285 = scalar_lea.vmem %s3, %s284
        %s286 = smul.u32 7, %s20
      $region40: #{mixed_5a.1} parent=23 // pred_fallthru
        _
    $region24: #{mixed_5a.1} parent=5 // pred_fallthru
      _
    %p287 = scmp.le.s32.totalorder 1, %s12
    %p288 = scmp.lt.s32.totalorder %s12, 5
    %p289 = pnand %p287, %p288
    %p290 = pneg %p289
    // Predicated region
    $region41: #{mixed_5a.1} parent=5 // pred_check
      _
    $region42: #{mixed_5a.1} parent=5 // pred_check_branch
      %292 = sbr.rel (%p289) target = $region44
    $region43: #{mixed_5a.1} parent=5 // pred_region
      %s293 = ssub.s32 %s12, 1
      %s294 = smul.u32 %s21, 2
      %s295 = sadd.s32 %s294, %s22
      %p296 = scmp.lt.s32.totalorder %s295, 3
      %s297 = scalar_select %p296, %s295, 3
      %s298 = smul.addr %s297, 32
      %s299 = smul.addr %s298, 4
      %s300 = scalar_lea.vmem %s0, %s299
      %p301 = pneg %p54
      %p302 = pneg %p51
      %s303 = smul.u32 %s21, 2
      %s304 = sadd.s32 %s303, %s22
      %p305 = scmp.lt.s32.totalorder %s304, 3
      %s306 = scalar_select %p305, %s304, 3
      %s307 = smul.addr %s306, 16
      %s308 = smul.addr %s307, 4
      %s309 = scalar_lea.vmem %s1, %s308
      %p310 = pneg %p84
      %p311 = pneg %p81
      %s312 = smul.u32 7, %s22
      %p313 = scmp.lt.s32.totalorder %s21, 1
      %s314 = scalar_select %p313, %s21, 1
      %p315 = scmp.lt.s32.totalorder %s312, 13
      %s316 = scalar_select %p315, %s312, 13
      %s317 = smul.addr %s316, 4
      %s318 = smul.addr %s314, 56
      %s319 = sadd.s32 %s317, %s318
      %s320 = smul.addr %s319, 4
      %s321 = scalar_lea.vmem %s2, %s320
      %p322 = pneg %p112
      %p323 = pneg %p109
      %s324 = smul.u32 7, %s22
      %p325 = scmp.lt.s32.totalorder %s21, 1
      %s326 = scalar_select %p325, %s21, 1
      %p327 = scmp.lt.s32.totalorder %s324, 13
      %s328 = scalar_select %p327, %s324, 13
      %s329 = smul.addr %s328, 2
      %s330 = smul.addr %s326, 28
      %s331 = sadd.s32 %s329, %s330
      %s332 = smul.addr %s331, 4
      %s333 = scalar_lea.vmem %s3, %s332
      %p334 = pneg %p140
      %p335 = pneg %p137
      %p336 = pneg %p161
      %p337 = pneg %p158
      %p338 = pneg %p182
      %p339 = pneg %p179
      %p340 = pneg %p210
      %p341 = pneg %p207
      %s342 = smul.u32 7, %s22
      %p343 = scmp.lt.s32.totalorder %s21, 1
      %s344 = scalar_select %p343, %s21, 1
      %p345 = scmp.lt.s32.totalorder %s342, 13
      %s346 = scalar_select %p345, %s342, 13
      %s347 = smul.addr %s346, 3
      %s348 = smul.addr %s344, 42
      %s349 = sadd.s32 %s347, %s348
      %s350 = smul.addr %s349, 4
      %s351 = scalar_lea.vmem %s6, %s350
      %s352 = smul.u32 %s21, 2
      %s353 = sadd.s32 %s352, %s22
      %p354 = scmp.lt.s32.totalorder %s353, 3
      %s355 = scalar_select %p354, %s353, 3
      %s356 = smul.addr %s355, 32
      %s357 = smul.addr %s356, 4
      %s358 = scalar_lea.vmem %s0, %s357
      %s359 = smul.u32 %s21, 2
      %s360 = sadd.s32 %s359, %s22
      %s361 = smul.u32 %s21, 2
      %s362 = sadd.s32 %s361, %s22
      %p363 = scmp.lt.s32.totalorder %s362, 3
      %s364 = scalar_select %p363, %s362, 3
      %s365 = smul.addr %s364, 16
      %s366 = smul.addr %s365, 4
      %s367 = scalar_lea.vmem %s1, %s366
      %s368 = smul.u32 %s21, 2
      %s369 = sadd.s32 %s368, %s22
      %s370 = smul.u32 7, %s22
      %p371 = scmp.lt.s32.totalorder %s21, 1
      %s372 = scalar_select %p371, %s21, 1
      %p373 = scmp.lt.s32.totalorder %s370, 13
      %s374 = scalar_select %p373, %s370, 13
      %s375 = smul.addr %s374, 4
      %s376 = smul.addr %s372, 56
      %s377 = sadd.s32 %s375, %s376
      %s378 = smul.addr %s377, 4
      %s379 = scalar_lea.vmem %s2, %s378
      %s380 = smul.u32 7, %s22
      %s381 = smul.u32 7, %s22
      %p382 = scmp.lt.s32.totalorder %s21, 1
      %s383 = scalar_select %p382, %s21, 1
      %p384 = scmp.lt.s32.totalorder %s381, 13
      %s385 = scalar_select %p384, %s381, 13
      %s386 = smul.addr %s385, 2
      %s387 = smul.addr %s383, 28
      %s388 = sadd.s32 %s386, %s387
      %s389 = smul.addr %s388, 4
      %s390 = scalar_lea.vmem %s3, %s389
      %s391 = smul.u32 7, %s22
      %s392 = smul.u32 7, %s22
      %p393 = scmp.lt.s32.totalorder %s21, 1
      %s394 = scalar_select %p393, %s21, 1
      %p395 = scmp.lt.s32.totalorder %s392, 13
      %s396 = scalar_select %p395, %s392, 13
      %s397 = smul.addr %s396, 3
      %s398 = smul.addr %s394, 42
      %s399 = sadd.s32 %s397, %s398
      %s400 = smul.addr %s399, 4
      %s401 = scalar_lea.vmem %s6, %s400
      %s402 = smul.u32 7, %s22
      %v404 = vld [vmem:[%s358] sm:$0xff]
      %v405 = vld [vmem:[%s358 + $0x8] sm:$0x11]
      %v406 = vld [vmem:[%s358 + $0x10] sm:$0xff]
      %v407 = vld [vmem:[%s358 + $0x18] sm:$0x11]
      %v408 = vld [vmem:[%s358 + $0x20] sm:$0xff]
      %v409 = vld [vmem:[%s358 + $0x28] sm:$0x11]
      %v410 = vld [vmem:[%s358 + $0x30] sm:$0xff]
      %v411 = vld [vmem:[%s358 + $0x38] sm:$0x11]
      %v412 = vld [vmem:[%s358 + $0x40] sm:$0xff]
      %v413 = vld [vmem:[%s358 + $0x48] sm:$0x11]
      %v414 = vld [vmem:[%s358 + $0x50] sm:$0xff]
      %v415 = vld [vmem:[%s358 + $0x58] sm:$0x11]
      %v416 = vld [vmem:[%s358 + $0x60] sm:$0xff]
      %v417 = vld [vmem:[%s358 + $0x68] sm:$0x11]
      %v418 = vld [vmem:[%s358 + $0x70] sm:$0xff]
      %v419 = vld [vmem:[%s358 + $0x78] sm:$0x11]
      %v420 = vld [vmem:[%s367] sm:$0xff]
      %v421 = vld [vmem:[%s367 + $0x8] sm:$0xff]
      %v422 = vld [vmem:[%s367 + $0x10] sm:$0xff]
      %v423 = vld [vmem:[%s367 + $0x18] sm:$0xff]
      %v424 = vld [vmem:[%s367 + $0x20] sm:$0xff]
      %v425 = vld [vmem:[%s367 + $0x28] sm:$0xff]
      %v426 = vld [vmem:[%s367 + $0x30] sm:$0xff]
      %v427 = vld [vmem:[%s367 + $0x38] sm:$0xff]
      %v428 = vld [vmem:[%s379] sm:$0xff]
      %v429 = vld [vmem:[%s379 + $0x8] sm:$0x11]
      %v430 = vld [vmem:[%s379 + $0x10] sm:$0xff]
      %v431 = vld [vmem:[%s379 + $0x18] sm:$0x11]
      %v432 = vld [vmem:[%s379 + $0x20] sm:$0xff]
      %v433 = vld [vmem:[%s379 + $0x28] sm:$0x11]
      %v434 = vld [vmem:[%s379 + $0x30] sm:$0xff]
      %v435 = vld [vmem:[%s379 + $0x38] sm:$0x11]
      %v436 = vld [vmem:[%s379 + $0x40] sm:$0xff]
      %v437 = vld [vmem:[%s379 + $0x48] sm:$0x11]
      %v438 = vld [vmem:[%s379 + $0x50] sm:$0xff]
      %v439 = vld [vmem:[%s379 + $0x58] sm:$0x11]
      %v440 = vld [vmem:[%s379 + $0x60] sm:$0xff]
      %v441 = vld [vmem:[%s379 + $0x68] sm:$0x11]
      %v442 = vld [vmem:[%s390] sm:$0xff]
      %v443 = vld [vmem:[%s390 + $0x8] sm:$0xff]
      %v444 = vld [vmem:[%s390 + $0x10] sm:$0xff]
      %v445 = vld [vmem:[%s390 + $0x18] sm:$0xff]
      %v446 = vld [vmem:[%s390 + $0x20] sm:$0xff]
      %v447 = vld [vmem:[%s390 + $0x28] sm:$0xff]
      %v448 = vld [vmem:[%s390 + $0x30] sm:$0xff]
      %vm449 = vsmask.f32 3328
      %vm450 = vsmask.f32 7440
      %vm451 = vmor %vm449, %vm450
      %v453 = vshrl.u32 %v404, 16
      %v455 = vrot.slane %v453, 4
      %v456 = vshll.u32 %v404, 16
      %v458 = vrot.slane %v456, 5
      %v459 = vor.u32 %v455, %v458
      %v460 = vrot.slane %v459, 4
      %v462 = vshll.u32 %v405, 16
      %v464 = vrot.slane %v462, 5
      %v465 = vsel %vm451, %v460, %v464
      %v467 = vshrl.u32 %v406, 16
      %v469 = vrot.slane %v467, 4
      %v470 = vshll.u32 %v406, 16
      %v472 = vrot.slane %v470, 5
      %v473 = vor.u32 %v469, %v472
      %v474 = vrot.slane %v473, 4
      %v476 = vshll.u32 %v407, 16
      %v478 = vrot.slane %v476, 5
      %v479 = vsel %vm451, %v474, %v478
      %v481 = vshrl.u32 %v408, 16
      %v483 = vrot.slane %v481, 4
      %v484 = vshll.u32 %v408, 16
      %v486 = vrot.slane %v484, 5
      %v487 = vor.u32 %v483, %v486
      %v488 = vrot.slane %v487, 4
      %v490 = vshll.u32 %v409, 16
      %v492 = vrot.slane %v490, 5
      %v493 = vsel %vm451, %v488, %v492
      %v495 = vshrl.u32 %v410, 16
      %v497 = vrot.slane %v495, 4
      %v498 = vshll.u32 %v410, 16
      %v500 = vrot.slane %v498, 5
      %v501 = vor.u32 %v497, %v500
      %v502 = vrot.slane %v501, 4
      %v504 = vshll.u32 %v411, 16
      %v506 = vrot.slane %v504, 5
      %v507 = vsel %vm451, %v502, %v506
      %v509 = vshrl.u32 %v412, 16
      %v511 = vrot.slane %v509, 4
      %v512 = vshll.u32 %v412, 16
      %v514 = vrot.slane %v512, 5
      %v515 = vor.u32 %v511, %v514
      %v516 = vrot.slane %v515, 4
      %v518 = vshll.u32 %v413, 16
      %v520 = vrot.slane %v518, 5
      %v521 = vsel %vm451, %v516, %v520
      %v523 = vshrl.u32 %v414, 16
      %v525 = vrot.slane %v523, 4
      %v526 = vshll.u32 %v414, 16
      %v528 = vrot.slane %v526, 5
      %v529 = vor.u32 %v525, %v528
      %v530 = vrot.slane %v529, 4
      %v532 = vshll.u32 %v415, 16
      %v534 = vrot.slane %v532, 5
      %v535 = vsel %vm451, %v530, %v534
      %v537 = vshrl.u32 %v416, 16
      %v539 = vrot.slane %v537, 4
      %v540 = vshll.u32 %v416, 16
      %v542 = vrot.slane %v540, 5
      %v543 = vor.u32 %v539, %v542
      %v544 = vrot.slane %v543, 4
      %v546 = vshll.u32 %v417, 16
      %v548 = vrot.slane %v546, 5
      %v549 = vsel %vm451, %v544, %v548
      %v558 = vshrl.u32 %v428, 16
      %v560 = vrot.slane %v558, 4
      %v561 = vshll.u32 %v428, 16
      %v563 = vrot.slane %v561, 5
      %v564 = vor.u32 %v560, %v563
      %v565 = vrot.slane %v564, 4
      %v567 = vshll.u32 %v429, 16
      %v569 = vrot.slane %v567, 5
      %v570 = vsel %vm451, %v565, %v569
      %v572 = vshrl.u32 %v430, 16
      %v574 = vrot.slane %v572, 4
      %v575 = vshll.u32 %v430, 16
      %v577 = vrot.slane %v575, 5
      %v578 = vor.u32 %v574, %v577
      %v579 = vrot.slane %v578, 4
      %v581 = vshll.u32 %v431, 16
      %v583 = vrot.slane %v581, 5
      %v584 = vsel %vm451, %v579, %v583
      %v586 = vshrl.u32 %v432, 16
      %v588 = vrot.slane %v586, 4
      %v589 = vshll.u32 %v432, 16
      %v591 = vrot.slane %v589, 5
      %v592 = vor.u32 %v588, %v591
      %v593 = vrot.slane %v592, 4
      %v595 = vshll.u32 %v433, 16
      %v597 = vrot.slane %v595, 5
      %v598 = vsel %vm451, %v593, %v597
      %v600 = vshrl.u32 %v434, 16
      %v602 = vrot.slane %v600, 4
      %v603 = vshll.u32 %v434, 16
      %v605 = vrot.slane %v603, 5
      %v606 = vor.u32 %v602, %v605
      %v607 = vrot.slane %v606, 4
      %v609 = vshll.u32 %v435, 16
      %v611 = vrot.slane %v609, 5
      %v612 = vsel %vm451, %v607, %v611
      %v614 = vshrl.u32 %v436, 16
      %v616 = vrot.slane %v614, 4
      %v617 = vshll.u32 %v436, 16
      %v619 = vrot.slane %v617, 5
      %v620 = vor.u32 %v616, %v619
      %v621 = vrot.slane %v620, 4
      %v623 = vshll.u32 %v437, 16
      %v625 = vrot.slane %v623, 5
      %v626 = vsel %vm451, %v621, %v625
      %v628 = vshrl.u32 %v438, 16
      %v630 = vrot.slane %v628, 4
      %v631 = vshll.u32 %v438, 16
      %v633 = vrot.slane %v631, 5
      %v634 = vor.u32 %v630, %v633
      %v635 = vrot.slane %v634, 4
      %v637 = vshll.u32 %v439, 16
      %v639 = vrot.slane %v637, 5
      %v640 = vsel %vm451, %v635, %v639
      %v642 = vshrl.u32 %v440, 16
      %v644 = vrot.slane %v642, 4
      %v645 = vshll.u32 %v440, 16
      %v647 = vrot.slane %v645, 5
      %v648 = vor.u32 %v644, %v647
      %v649 = vrot.slane %v648, 4
      %v651 = vshll.u32 %v441, 16
      %v653 = vrot.slane %v651, 5
      %v654 = vsel %vm451, %v649, %v653
      %v663 = vshrl.u32 %v418, 16
      %v665 = vrot.slane %v663, 4
      %v666 = vshll.u32 %v418, 16
      %v668 = vrot.slane %v666, 5
      %v669 = vor.u32 %v665, %v668
      %v670 = vrot.slane %v669, 4
      %v672 = vshll.u32 %v419, 16
      %v674 = vrot.slane %v672, 5
      %v675 = vsel %vm451, %v670, %v674
      %v677 = vld [vmem:[%s4] sm:$0xff]
      %v678 = vld [vmem:[%s4 + $0x8] sm:$0xff]
      %v679 = vld [vmem:[%s4 + $0x10] sm:$0xff]
      %v680 = vld [vmem:[%s4 + $0x18] sm:$0xff]
      %v681 = vld [vmem:[%s4 + $0x20] sm:$0xff]
      %v682 = vld [vmem:[%s4 + $0x28] sm:$0xff]
      %v683 = vld [vmem:[%s4 + $0x30] sm:$0xff]
      %v684 = vld [vmem:[%s4 + $0x38] sm:$0xff]
      %v685 = vld [vmem:[%s4 + $0x40] sm:$0xff]
      %v686 = vld [vmem:[%s4 + $0x48] sm:$0xff]
      %v687 = vld [vmem:[%s4 + $0x50] sm:$0xff]
      %v688 = vld [vmem:[%s4 + $0x58] sm:$0xff]
      %v689 = vld [vmem:[%s4 + $0x60] sm:$0xff]
      %v690 = vld [vmem:[%s4 + $0x68] sm:$0xff]
      %v691 = vld [vmem:[%s4 + $0x70] sm:$0xff]
      %v692 = vld [vmem:[%s4 + $0x78] sm:$0xff]
      %v693 = vld [vmem:[%s4 + $0x80] sm:$0xff]
      %v694 = vld [vmem:[%s4 + $0x88] sm:$0xff]
      %v695 = vld [vmem:[%s4 + $0x90] sm:$0xff]
      %v696 = vld [vmem:[%s4 + $0x98] sm:$0xff]
      %v697 = vld [vmem:[%s4 + $0xa0] sm:$0xff]
      %v698 = vld [vmem:[%s4 + $0xa8] sm:$0xff]
      %v699 = vld [vmem:[%s4 + $0xb0] sm:$0xff]
      %v700 = vld [vmem:[%s4 + $0xb8] sm:$0xff]
      %s701 = scalar_lea.vmem %s4, 192
      %v702 = vld [vmem:[%s701] sm:$0xff]
      %v703 = vld [vmem:[%s701 + $0x8] sm:$0xff]
      %v704 = vld [vmem:[%s701 + $0x10] sm:$0xff]
      %v705 = vld [vmem:[%s701 + $0x18] sm:$0xff]
      %v706 = vld [vmem:[%s701 + $0x20] sm:$0xff]
      %v707 = vld [vmem:[%s701 + $0x28] sm:$0xff]
      %v708 = vld [vmem:[%s701 + $0x30] sm:$0xff]
      %v709 = vld [vmem:[%s701 + $0x38] sm:$0xff]
      %v710 = vld [vmem:[%s701 + $0x40] sm:$0xff]
      %v711 = vld [vmem:[%s701 + $0x48] sm:$0xff]
      %v712 = vld [vmem:[%s701 + $0x50] sm:$0xff]
      %v713 = vld [vmem:[%s701 + $0x58] sm:$0xff]
      %v714 = vld [vmem:[%s701 + $0x60] sm:$0xff]
      %v715 = vld [vmem:[%s701 + $0x68] sm:$0xff]
      %v716 = vld [vmem:[%s701 + $0x70] sm:$0xff]
      %v717 = vld [vmem:[%s701 + $0x78] sm:$0xff]
      %v718 = vld [vmem:[%s701 + $0x80] sm:$0xff]
      %v719 = vld [vmem:[%s701 + $0x88] sm:$0xff]
      %v720 = vld [vmem:[%s701 + $0x90] sm:$0xff]
      %v721 = vld [vmem:[%s701 + $0x98] sm:$0xff]
      %v722 = vld [vmem:[%s701 + $0xa0] sm:$0xff]
      %v723 = vld [vmem:[%s701 + $0xa8] sm:$0xff]
      %v724 = vld [vmem:[%s701 + $0xb0] sm:$0xff]
      %v725 = vld [vmem:[%s701 + $0xb8] sm:$0xff]
      %v733 = vunpack.c.l.b16 %v420
      %v734 = vunpack.c.h.b16 %v420
      %v735 = vunpack.c.l.b16 %v421
      %v736 = vunpack.c.h.b16 %v421
      %v737 = vunpack.c.l.b16 %v422
      %v738 = vunpack.c.h.b16 %v422
      %v739 = vunpack.c.l.b16 %v423
      %v740 = vunpack.c.h.b16 %v423
      %v741 = vunpack.c.l.b16 %v424
      %v742 = vunpack.c.h.b16 %v424
      %v743 = vunpack.c.l.b16 %v425
      %v744 = vunpack.c.h.b16 %v425
      %v745 = vunpack.c.l.b16 %v426
      %v746 = vunpack.c.h.b16 %v426
      %v747 = vpack.c.b16 %v735, %v733
      %v748 = vpack.c.b16 %v736, %v734
      %v749 = vpack.c.b16 %v739, %v737
      %v750 = vpack.c.b16 %v740, %v738
      %v751 = vpack.c.b16 %v743, %v741
      %v752 = vpack.c.b16 %v744, %v742
      %v753 = vpack.c.b16 %v745, %v745
      %v754 = vpack.c.b16 %v746, %v746
      %v783 = vunpack.c.l.b16 %v702
      %v784 = vunpack.c.h.b16 %v702
      %v785 = vunpack.c.l.b16 %v703
      %v786 = vunpack.c.h.b16 %v703
      %v787 = vunpack.c.l.b16 %v704
      %v788 = vunpack.c.h.b16 %v704
      %v789 = vunpack.c.l.b16 %v705
      %v790 = vunpack.c.h.b16 %v705
      %v791 = vunpack.c.l.b16 %v706
      %v792 = vunpack.c.h.b16 %v706
      %v793 = vunpack.c.l.b16 %v707
      %v794 = vunpack.c.h.b16 %v707
      %v795 = vunpack.c.l.b16 %v708
      %v796 = vunpack.c.h.b16 %v708
      %v797 = vunpack.c.l.b16 %v709
      %v798 = vunpack.c.h.b16 %v709
      %v799 = vunpack.c.l.b16 %v710
      %v800 = vunpack.c.h.b16 %v710
      %v801 = vunpack.c.l.b16 %v711
      %v802 = vunpack.c.h.b16 %v711
      %v803 = vunpack.c.l.b16 %v712
      %v804 = vunpack.c.h.b16 %v712
      %v805 = vunpack.c.l.b16 %v713
      %v806 = vunpack.c.h.b16 %v713
      %v807 = vunpack.c.l.b16 %v714
      %v808 = vunpack.c.h.b16 %v714
      %v809 = vunpack.c.l.b16 %v715
      %v810 = vunpack.c.h.b16 %v715
      %v811 = vunpack.c.l.b16 %v716
      %v812 = vunpack.c.h.b16 %v716
      %v813 = vunpack.c.l.b16 %v717
      %v814 = vunpack.c.h.b16 %v717
      %v815 = vunpack.c.l.b16 %v718
      %v816 = vunpack.c.h.b16 %v718
      %v817 = vunpack.c.l.b16 %v719
      %v818 = vunpack.c.h.b16 %v719
      %v819 = vunpack.c.l.b16 %v720
      %v820 = vunpack.c.h.b16 %v720
      %v821 = vunpack.c.l.b16 %v721
      %v822 = vunpack.c.h.b16 %v721
      %v823 = vunpack.c.l.b16 %v722
      %v824 = vunpack.c.h.b16 %v722
      %v825 = vunpack.c.l.b16 %v723
      %v826 = vunpack.c.h.b16 %v723
      %v827 = vunpack.c.l.b16 %v724
      %v828 = vunpack.c.h.b16 %v724
      %v829 = vunpack.c.l.b16 %v725
      %v830 = vunpack.c.h.b16 %v725
      %v831 = vpack.c.b16 %v785, %v783
      %v832 = vpack.c.b16 %v786, %v784
      %v833 = vpack.c.b16 %v789, %v787
      %v834 = vpack.c.b16 %v790, %v788
      %v835 = vpack.c.b16 %v793, %v791
      %v836 = vpack.c.b16 %v794, %v792
      %v837 = vpack.c.b16 %v797, %v795
      %v838 = vpack.c.b16 %v798, %v796
      %v839 = vpack.c.b16 %v801, %v799
      %v840 = vpack.c.b16 %v802, %v800
      %v841 = vpack.c.b16 %v805, %v803
      %v842 = vpack.c.b16 %v806, %v804
      %v843 = vpack.c.b16 %v809, %v807
      %v844 = vpack.c.b16 %v810, %v808
      %v845 = vpack.c.b16 %v813, %v811
      %v846 = vpack.c.b16 %v814, %v812
      %v847 = vpack.c.b16 %v817, %v815
      %v848 = vpack.c.b16 %v818, %v816
      %v849 = vpack.c.b16 %v821, %v819
      %v850 = vpack.c.b16 %v822, %v820
      %v851 = vpack.c.b16 %v825, %v823
      %v852 = vpack.c.b16 %v826, %v824
      %v853 = vpack.c.b16 %v829, %v827
      %v854 = vpack.c.b16 %v830, %v828
      %vm879 = vcmask 523264
      %v881 = vsel %vm879, %v748, 0
      %v884 = vsel %vm879, %v750, 0
      %v887 = vsel %vm879, %v752, 0
      %v890 = vsel %vm879, %v754, 0
      %892 = vmatprep.subr.bf16.mxu0 %v846
      %893 = vmatpush1.bf16.msra.mxu0 %v845
      %894 = vmatprep.subr.bf16.mxu0 %v844
      %895 = vmatpush1.bf16.msra.mxu0 %v843
      %896 = vmatprep.subr.bf16.mxu0 %v842
      %897 = vmatpush1.bf16.msra.mxu0 %v841
      %898 = vmatprep.subr.bf16.mxu0 %v840
      %899 = vmatpush1.bf16.msra.mxu0 %v839
      %900 = vmatprep.subr.bf16.mxu0 %v838
      %901 = vmatpush1.bf16.msra.mxu0 %v837
      %902 = vmatprep.subr.bf16.mxu0 %v836
      %903 = vmatpush1.bf16.msra.mxu0 %v835
      %904 = vmatprep.subr.bf16.mxu0 %v834
      %905 = vmatpush1.bf16.msra.mxu0 %v833
      %906 = vmatprep.subr.bf16.mxu0 %v832
      %907 = vmatpush1.bf16.msra.mxu0 %v831
      %908 = vmatprep.subr.bf16.mxu0 0
      %909 = vmatpush2.bf16.msra.mxu0 0
      %910 = vmatprep.subr.bf16.mxu0 0
      %911 = vmatpush2.bf16.msra.mxu0 0
      %912 = vmatprep.subr.bf16.mxu0 0
      %913 = vmatpush2.bf16.msra.mxu0 0
      %914 = vmatprep.subr.bf16.mxu0 0
      %915 = vmatpush2.bf16.msra.mxu0 0
      %916 = vmatprep.subr.bf16.mxu0 %v854
      %917 = vmatpush2.bf16.msra.mxu0 %v853
      %918 = vmatprep.subr.bf16.mxu0 %v852
      %919 = vmatpush2.bf16.msra.mxu0 %v851
      %920 = vmatprep.subr.bf16.mxu0 %v850
      %921 = vmatpush2.bf16.msra.mxu0 %v849
      %922 = vmatprep.subr.bf16.mxu0 %v848
      %923 = vmatpush2.bf16.msra.mxu0 %v847
      %924 = vmatprep.mubr.bf16.mxu0 %v881
      %925 = vmatmul.mubr.bf16.gmra.mxu0 %v747
      %v926 = vpop.f32.mrf.mxu0
      %v927 = vadd.f32 0.0, %v926
      %v928 = vpop.f32.mrf.mxu0
      %v929 = vadd.f32 0.0, %v928
      %v930 = vpop.f32.mrf.mxu0
      %v931 = vadd.f32 0.0, %v930
      %v932 = vpop.f32.mrf.mxu0
      %v933 = vadd.f32 0.0, %v932
      %934 = vmatprep.mubr.bf16.mxu0 %v884
      %935 = vmatmul.mubr.bf16.gmra.mxu0 %v749
      %v936 = vpop.f32.mrf.mxu0
      %v937 = vadd.f32 0.0, %v936
      %v938 = vpop.f32.mrf.mxu0
      %v939 = vadd.f32 0.0, %v938
      %v940 = vpop.f32.mrf.mxu0
      %v941 = vadd.f32 0.0, %v940
      %v942 = vpop.f32.mrf.mxu0
      %v943 = vadd.f32 0.0, %v942
      %944 = vmatprep.mubr.bf16.mxu0 %v887
      %945 = vmatmul.mubr.bf16.gmra.mxu0 %v751
      %v946 = vpop.f32.mrf.mxu0
      %v947 = vadd.f32 0.0, %v946
      %v948 = vpop.f32.mrf.mxu0
      %v949 = vadd.f32 0.0, %v948
      %v950 = vpop.f32.mrf.mxu0
      %v951 = vadd.f32 0.0, %v950
      %v952 = vpop.f32.mrf.mxu0
      %v953 = vadd.f32 0.0, %v952
      %954 = vmatprep.mubr.bf16.mxu0 %v890
      %955 = vmatmul.mubr.bf16.gmra.mxu0 %v753
      %v956 = vpop.f32.mrf.mxu0
      %v957 = vadd.f32 0.0, %v956
      %v958 = vpop.f32.mrf.mxu0
      %v959 = vadd.f32 0.0, %v958
      %v960 = vpop.f32.mrf.mxu0
      %v961 = vpop.f32.mrf.mxu0
      %962 = vdwg.mxu0
      %v970 = vunpack.c.l.b16 %v404
      %v971 = vunpack.c.h.b16 %v404
      %v972 = vunpack.c.l.b16 %v406
      %v973 = vunpack.c.h.b16 %v406
      %v974 = vunpack.c.l.b16 %v408
      %v975 = vunpack.c.h.b16 %v408
      %v976 = vunpack.c.l.b16 %v410
      %v977 = vunpack.c.h.b16 %v410
      %v978 = vunpack.c.l.b16 %v412
      %v979 = vunpack.c.h.b16 %v412
      %v980 = vunpack.c.l.b16 %v414
      %v981 = vunpack.c.h.b16 %v414
      %v982 = vunpack.c.l.b16 %v416
      %v983 = vunpack.c.h.b16 %v416
      %v984 = vpack.c.b16 %v972, %v970
      %v985 = vpack.c.b16 %v973, %v971
      %v986 = vpack.c.b16 %v976, %v974
      %v987 = vpack.c.b16 %v977, %v975
      %v988 = vpack.c.b16 %v980, %v978
      %v989 = vpack.c.b16 %v981, %v979
      %v990 = vpack.c.b16 %v982, %v982
      %v991 = vpack.c.b16 %v983, %v983
      %v1020 = vunpack.c.l.b16 %v677
      %v1021 = vunpack.c.h.b16 %v677
      %v1022 = vunpack.c.l.b16 %v678
      %v1023 = vunpack.c.h.b16 %v678
      %v1024 = vunpack.c.l.b16 %v679
      %v1025 = vunpack.c.h.b16 %v679
      %v1026 = vunpack.c.l.b16 %v680
      %v1027 = vunpack.c.h.b16 %v680
      %v1028 = vunpack.c.l.b16 %v681
      %v1029 = vunpack.c.h.b16 %v681
      %v1030 = vunpack.c.l.b16 %v682
      %v1031 = vunpack.c.h.b16 %v682
      %v1032 = vunpack.c.l.b16 %v683
      %v1033 = vunpack.c.h.b16 %v683
      %v1034 = vunpack.c.l.b16 %v684
      %v1035 = vunpack.c.h.b16 %v684
      %v1036 = vunpack.c.l.b16 %v685
      %v1037 = vunpack.c.h.b16 %v685
      %v1038 = vunpack.c.l.b16 %v686
      %v1039 = vunpack.c.h.b16 %v686
      %v1040 = vunpack.c.l.b16 %v687
      %v1041 = vunpack.c.h.b16 %v687
      %v1042 = vunpack.c.l.b16 %v688
      %v1043 = vunpack.c.h.b16 %v688
      %v1044 = vunpack.c.l.b16 %v689
      %v1045 = vunpack.c.h.b16 %v689
      %v1046 = vunpack.c.l.b16 %v690
      %v1047 = vunpack.c.h.b16 %v690
      %v1048 = vunpack.c.l.b16 %v691
      %v1049 = vunpack.c.h.b16 %v691
      %v1050 = vunpack.c.l.b16 %v692
      %v1051 = vunpack.c.h.b16 %v692
      %v1052 = vunpack.c.l.b16 %v693
      %v1053 = vunpack.c.h.b16 %v693
      %v1054 = vunpack.c.l.b16 %v694
      %v1055 = vunpack.c.h.b16 %v694
      %v1056 = vunpack.c.l.b16 %v695
      %v1057 = vunpack.c.h.b16 %v695
      %v1058 = vunpack.c.l.b16 %v696
      %v1059 = vunpack.c.h.b16 %v696
      %v1060 = vunpack.c.l.b16 %v697
      %v1061 = vunpack.c.h.b16 %v697
      %v1062 = vunpack.c.l.b16 %v698
      %v1063 = vunpack.c.h.b16 %v698
      %v1064 = vunpack.c.l.b16 %v699
      %v1065 = vunpack.c.h.b16 %v699
      %v1066 = vunpack.c.l.b16 %v700
      %v1067 = vunpack.c.h.b16 %v700
      %v1068 = vpack.c.b16 %v1022, %v1020
      %v1069 = vpack.c.b16 %v1023, %v1021
      %v1070 = vpack.c.b16 %v1026, %v1024
      %v1071 = vpack.c.b16 %v1027, %v1025
      %v1072 = vpack.c.b16 %v1030, %v1028
      %v1073 = vpack.c.b16 %v1031, %v1029
      %v1074 = vpack.c.b16 %v1034, %v1032
      %v1075 = vpack.c.b16 %v1035, %v1033
      %v1076 = vpack.c.b16 %v1038, %v1036
      %v1077 = vpack.c.b16 %v1039, %v1037
      %v1078 = vpack.c.b16 %v1042, %v1040
      %v1079 = vpack.c.b16 %v1043, %v1041
      %v1080 = vpack.c.b16 %v1046, %v1044
      %v1081 = vpack.c.b16 %v1047, %v1045
      %v1082 = vpack.c.b16 %v1050, %v1048
      %v1083 = vpack.c.b16 %v1051, %v1049
      %v1084 = vpack.c.b16 %v1054, %v1052
      %v1085 = vpack.c.b16 %v1055, %v1053
      %v1086 = vpack.c.b16 %v1058, %v1056
      %v1087 = vpack.c.b16 %v1059, %v1057
      %v1088 = vpack.c.b16 %v1062, %v1060
      %v1089 = vpack.c.b16 %v1063, %v1061
      %v1090 = vpack.c.b16 %v1066, %v1064
      %v1091 = vpack.c.b16 %v1067, %v1065
      %v1117 = vsel %vm879, %v985, 0
      %v1120 = vsel %vm879, %v987, 0
      %v1123 = vsel %vm879, %v989, 0
      %v1126 = vsel %vm879, %v991, 0
      %1128 = vmatprep.subr.bf16.mxu0 %v1083
      %1129 = vmatpush1.bf16.msra.mxu0 %v1082
      %1130 = vmatprep.subr.bf16.mxu0 %v1081
      %1131 = vmatpush1.bf16.msra.mxu0 %v1080
      %1132 = vmatprep.subr.bf16.mxu0 %v1079
      %1133 = vmatpush1.bf16.msra.mxu0 %v1078
      %1134 = vmatprep.subr.bf16.mxu0 %v1077
      %1135 = vmatpush1.bf16.msra.mxu0 %v1076
      %1136 = vmatprep.subr.bf16.mxu0 %v1075
      %1137 = vmatpush1.bf16.msra.mxu0 %v1074
      %1138 = vmatprep.subr.bf16.mxu0 %v1073
      %1139 = vmatpush1.bf16.msra.mxu0 %v1072
      %1140 = vmatprep.subr.bf16.mxu0 %v1071
      %1141 = vmatpush1.bf16.msra.mxu0 %v1070
      %1142 = vmatprep.subr.bf16.mxu0 %v1069
      %1143 = vmatpush1.bf16.msra.mxu0 %v1068
      %1144 = vmatprep.subr.bf16.mxu0 0
      %1145 = vmatpush2.bf16.msra.mxu0 0
      %1146 = vmatprep.subr.bf16.mxu0 0
      %1147 = vmatpush2.bf16.msra.mxu0 0
      %1148 = vmatprep.subr.bf16.mxu0 0
      %1149 = vmatpush2.bf16.msra.mxu0 0
      %1150 = vmatprep.subr.bf16.mxu0 0
      %1151 = vmatpush2.bf16.msra.mxu0 0
      %1152 = vmatprep.subr.bf16.mxu0 %v1091
      %1153 = vmatpush2.bf16.msra.mxu0 %v1090
      %1154 = vmatprep.subr.bf16.mxu0 %v1089
      %1155 = vmatpush2.bf16.msra.mxu0 %v1088
      %1156 = vmatprep.subr.bf16.mxu0 %v1087
      %1157 = vmatpush2.bf16.msra.mxu0 %v1086
      %1158 = vmatprep.subr.bf16.mxu0 %v1085
      %1159 = vmatpush2.bf16.msra.mxu0 %v1084
      %1160 = vmatprep.mubr.bf16.mxu0 %v1117
      %1161 = vmatmul.mubr.bf16.gmra.mxu0 %v984
      %v1162 = vpop.f32.mrf.mxu0
      %v1163 = vadd.f32 %v927, %v1162
      %v1164 = vpop.f32.mrf.mxu0
      %v1165 = vadd.f32 %v929, %v1164
      %v1166 = vpop.f32.mrf.mxu0
      %v1167 = vadd.f32 %v931, %v1166
      %v1168 = vpop.f32.mrf.mxu0
      %v1169 = vadd.f32 %v933, %v1168
      %1170 = vmatprep.mubr.bf16.mxu0 %v1120
      %1171 = vmatmul.mubr.bf16.gmra.mxu0 %v986
      %v1172 = vpop.f32.mrf.mxu0
      %v1173 = vadd.f32 %v937, %v1172
      %v1174 = vpop.f32.mrf.mxu0
      %v1175 = vadd.f32 %v939, %v1174
      %v1176 = vpop.f32.mrf.mxu0
      %v1177 = vadd.f32 %v941, %v1176
      %v1178 = vpop.f32.mrf.mxu0
      %v1179 = vadd.f32 %v943, %v1178
      %1180 = vmatprep.mubr.bf16.mxu0 %v1123
      %1181 = vmatmul.mubr.bf16.gmra.mxu0 %v988
      %v1182 = vpop.f32.mrf.mxu0
      %v1183 = vadd.f32 %v947, %v1182
      %v1184 = vpop.f32.mrf.mxu0
      %v1185 = vadd.f32 %v949, %v1184
      %v1186 = vpop.f32.mrf.mxu0
      %v1187 = vadd.f32 %v951, %v1186
      %v1188 = vpop.f32.mrf.mxu0
      %v1189 = vadd.f32 %v953, %v1188
      %1190 = vmatprep.mubr.bf16.mxu0 %v1126
      %1191 = vmatmul.mubr.bf16.gmra.mxu0 %v990
      %v1192 = vpop.f32.mrf.mxu0
      %v1193 = vadd.f32 %v957, %v1192
      %v1194 = vpop.f32.mrf.mxu0
      %v1195 = vadd.f32 %v959, %v1194
      %v1196 = vpop.f32.mrf.mxu0
      %v1197 = vpop.f32.mrf.mxu0
      %1198 = vdwg.mxu0
      %s1199 = scalar_lea.vmem %s4, 384
      %v1200 = vld [vmem:[%s1199] sm:$0xff]
      %v1201 = vld [vmem:[%s1199 + $0x8] sm:$0xff]
      %v1202 = vld [vmem:[%s1199 + $0x10] sm:$0xff]
      %v1203 = vld [vmem:[%s1199 + $0x18] sm:$0xff]
      %v1204 = vld [vmem:[%s1199 + $0x20] sm:$0xff]
      %v1205 = vld [vmem:[%s1199 + $0x28] sm:$0xff]
      %v1206 = vld [vmem:[%s1199 + $0x30] sm:$0xff]
      %v1207 = vld [vmem:[%s1199 + $0x38] sm:$0xff]
      %v1208 = vld [vmem:[%s1199 + $0x40] sm:$0xff]
      %v1209 = vld [vmem:[%s1199 + $0x48] sm:$0xff]
      %v1210 = vld [vmem:[%s1199 + $0x50] sm:$0xff]
      %v1211 = vld [vmem:[%s1199 + $0x58] sm:$0xff]
      %v1212 = vld [vmem:[%s1199 + $0x60] sm:$0xff]
      %v1213 = vld [vmem:[%s1199 + $0x68] sm:$0xff]
      %v1214 = vld [vmem:[%s1199 + $0x70] sm:$0xff]
      %v1215 = vld [vmem:[%s1199 + $0x78] sm:$0xff]
      %v1216 = vld [vmem:[%s1199 + $0x80] sm:$0xff]
      %v1217 = vld [vmem:[%s1199 + $0x88] sm:$0xff]
      %v1218 = vld [vmem:[%s1199 + $0x90] sm:$0xff]
      %v1219 = vld [vmem:[%s1199 + $0x98] sm:$0xff]
      %v1220 = vld [vmem:[%s1199 + $0xa0] sm:$0xff]
      %v1221 = vld [vmem:[%s1199 + $0xa8] sm:$0xff]
      %v1222 = vld [vmem:[%s1199 + $0xb0] sm:$0xff]
      %v1223 = vld [vmem:[%s1199 + $0xb8] sm:$0xff]
      %v1224 = vunpack.c.l.b16 %v465
      %v1225 = vunpack.c.h.b16 %v465
      %v1226 = vunpack.c.l.b16 %v479
      %v1227 = vunpack.c.h.b16 %v479
      %v1228 = vunpack.c.l.b16 %v493
      %v1229 = vunpack.c.h.b16 %v493
      %v1230 = vunpack.c.l.b16 %v507
      %v1231 = vunpack.c.h.b16 %v507
      %v1232 = vunpack.c.l.b16 %v521
      %v1233 = vunpack.c.h.b16 %v521
      %v1234 = vunpack.c.l.b16 %v535
      %v1235 = vunpack.c.h.b16 %v535
      %v1236 = vunpack.c.l.b16 %v549
      %v1237 = vunpack.c.h.b16 %v549
      %v1238 = vpack.c.b16 %v1226, %v1224
      %v1239 = vpack.c.b16 %v1227, %v1225
      %v1240 = vpack.c.b16 %v1230, %v1228
      %v1241 = vpack.c.b16 %v1231, %v1229
      %v1242 = vpack.c.b16 %v1234, %v1232
      %v1243 = vpack.c.b16 %v1235, %v1233
      %v1244 = vpack.c.b16 %v1236, %v1236
      %v1245 = vpack.c.b16 %v1237, %v1237
      %v1274 = vunpack.c.l.b16 %v1200
      %v1275 = vunpack.c.h.b16 %v1200
      %v1276 = vunpack.c.l.b16 %v1201
      %v1277 = vunpack.c.h.b16 %v1201
      %v1278 = vunpack.c.l.b16 %v1202
      %v1279 = vunpack.c.h.b16 %v1202
      %v1280 = vunpack.c.l.b16 %v1203
      %v1281 = vunpack.c.h.b16 %v1203
      %v1282 = vunpack.c.l.b16 %v1204
      %v1283 = vunpack.c.h.b16 %v1204
      %v1284 = vunpack.c.l.b16 %v1205
      %v1285 = vunpack.c.h.b16 %v1205
      %v1286 = vunpack.c.l.b16 %v1206
      %v1287 = vunpack.c.h.b16 %v1206
      %v1288 = vunpack.c.l.b16 %v1207
      %v1289 = vunpack.c.h.b16 %v1207
      %v1290 = vunpack.c.l.b16 %v1208
      %v1291 = vunpack.c.h.b16 %v1208
      %v1292 = vunpack.c.l.b16 %v1209
      %v1293 = vunpack.c.h.b16 %v1209
      %v1294 = vunpack.c.l.b16 %v1210
      %v1295 = vunpack.c.h.b16 %v1210
      %v1296 = vunpack.c.l.b16 %v1211
      %v1297 = vunpack.c.h.b16 %v1211
      %v1298 = vunpack.c.l.b16 %v1212
      %v1299 = vunpack.c.h.b16 %v1212
      %v1300 = vunpack.c.l.b16 %v1213
      %v1301 = vunpack.c.h.b16 %v1213
      %v1302 = vunpack.c.l.b16 %v1214
      %v1303 = vunpack.c.h.b16 %v1214
      %v1304 = vunpack.c.l.b16 %v1215
      %v1305 = vunpack.c.h.b16 %v1215
      %v1306 = vunpack.c.l.b16 %v1216
      %v1307 = vunpack.c.h.b16 %v1216
      %v1308 = vunpack.c.l.b16 %v1217
      %v1309 = vunpack.c.h.b16 %v1217
      %v1310 = vunpack.c.l.b16 %v1218
      %v1311 = vunpack.c.h.b16 %v1218
      %v1312 = vunpack.c.l.b16 %v1219
      %v1313 = vunpack.c.h.b16 %v1219
      %v1314 = vunpack.c.l.b16 %v1220
      %v1315 = vunpack.c.h.b16 %v1220
      %v1316 = vunpack.c.l.b16 %v1221
      %v1317 = vunpack.c.h.b16 %v1221
      %v1318 = vunpack.c.l.b16 %v1222
      %v1319 = vunpack.c.h.b16 %v1222
      %v1320 = vunpack.c.l.b16 %v1223
      %v1321 = vunpack.c.h.b16 %v1223
      %v1322 = vpack.c.b16 %v1276, %v1274
      %v1323 = vpack.c.b16 %v1277, %v1275
      %v1324 = vpack.c.b16 %v1280, %v1278
      %v1325 = vpack.c.b16 %v1281, %v1279
      %v1326 = vpack.c.b16 %v1284, %v1282
      %v1327 = vpack.c.b16 %v1285, %v1283
      %v1328 = vpack.c.b16 %v1288, %v1286
      %v1329 = vpack.c.b16 %v1289, %v1287
      %v1330 = vpack.c.b16 %v1292, %v1290
      %v1331 = vpack.c.b16 %v1293, %v1291
      %v1332 = vpack.c.b16 %v1296, %v1294
      %v1333 = vpack.c.b16 %v1297, %v1295
      %v1334 = vpack.c.b16 %v1300, %v1298
      %v1335 = vpack.c.b16 %v1301, %v1299
      %v1336 = vpack.c.b16 %v1304, %v1302
      %v1337 = vpack.c.b16 %v1305, %v1303
      %v1338 = vpack.c.b16 %v1308, %v1306
      %v1339 = vpack.c.b16 %v1309, %v1307
      %v1340 = vpack.c.b16 %v1312, %v1310
      %v1341 = vpack.c.b16 %v1313, %v1311
      %v1342 = vpack.c.b16 %v1316, %v1314
      %v1343 = vpack.c.b16 %v1317, %v1315
      %v1344 = vpack.c.b16 %v1320, %v1318
      %v1345 = vpack.c.b16 %v1321, %v1319
      %v1371 = vsel %vm879, %v1239, 0
      %v1374 = vsel %vm879, %v1241, 0
      %v1377 = vsel %vm879, %v1243, 0
      %v1380 = vsel %vm879, %v1245, 0
      %1382 = vmatprep.subr.bf16.mxu0 %v1337
      %1383 = vmatpush1.bf16.msra.mxu0 %v1336
      %1384 = vmatprep.subr.bf16.mxu0 %v1335
      %1385 = vmatpush1.bf16.msra.mxu0 %v1334
      %1386 = vmatprep.subr.bf16.mxu0 %v1333
      %1387 = vmatpush1.bf16.msra.mxu0 %v1332
      %1388 = vmatprep.subr.bf16.mxu0 %v1331
      %1389 = vmatpush1.bf16.msra.mxu0 %v1330
      %1390 = vmatprep.subr.bf16.mxu0 %v1329
      %1391 = vmatpush1.bf16.msra.mxu0 %v1328
      %1392 = vmatprep.subr.bf16.mxu0 %v1327
      %1393 = vmatpush1.bf16.msra.mxu0 %v1326
      %1394 = vmatprep.subr.bf16.mxu0 %v1325
      %1395 = vmatpush1.bf16.msra.mxu0 %v1324
      %1396 = vmatprep.subr.bf16.mxu0 %v1323
      %1397 = vmatpush1.bf16.msra.mxu0 %v1322
      %1398 = vmatprep.subr.bf16.mxu0 0
      %1399 = vmatpush2.bf16.msra.mxu0 0
      %1400 = vmatprep.subr.bf16.mxu0 0
      %1401 = vmatpush2.bf16.msra.mxu0 0
      %1402 = vmatprep.subr.bf16.mxu0 0
      %1403 = vmatpush2.bf16.msra.mxu0 0
      %1404 = vmatprep.subr.bf16.mxu0 0
      %1405 = vmatpush2.bf16.msra.mxu0 0
      %1406 = vmatprep.subr.bf16.mxu0 %v1345
      %1407 = vmatpush2.bf16.msra.mxu0 %v1344
      %1408 = vmatprep.subr.bf16.mxu0 %v1343
      %1409 = vmatpush2.bf16.msra.mxu0 %v1342
      %1410 = vmatprep.subr.bf16.mxu0 %v1341
      %1411 = vmatpush2.bf16.msra.mxu0 %v1340
      %1412 = vmatprep.subr.bf16.mxu0 %v1339
      %1413 = vmatpush2.bf16.msra.mxu0 %v1338
      %1414 = vmatprep.mubr.bf16.mxu0 %v1371
      %1415 = vmatmul.mubr.bf16.gmra.mxu0 %v1238
      %v1416 = vpop.f32.mrf.mxu0
      %v1417 = vadd.f32 0.0, %v1416
      %v1418 = vpop.f32.mrf.mxu0
      %v1419 = vadd.f32 0.0, %v1418
      %v1420 = vpop.f32.mrf.mxu0
      %v1421 = vadd.f32 0.0, %v1420
      %v1422 = vpop.f32.mrf.mxu0
      %v1423 = vadd.f32 0.0, %v1422
      %1424 = vmatprep.mubr.bf16.mxu0 %v1374
      %1425 = vmatmul.mubr.bf16.gmra.mxu0 %v1240
      %v1426 = vpop.f32.mrf.mxu0
      %v1427 = vadd.f32 0.0, %v1426
      %v1428 = vpop.f32.mrf.mxu0
      %v1429 = vadd.f32 0.0, %v1428
      %v1430 = vpop.f32.mrf.mxu0
      %v1431 = vadd.f32 0.0, %v1430
      %v1432 = vpop.f32.mrf.mxu0
      %v1433 = vadd.f32 0.0, %v1432
      %1434 = vmatprep.mubr.bf16.mxu0 %v1377
      %1435 = vmatmul.mubr.bf16.gmra.mxu0 %v1242
      %v1436 = vpop.f32.mrf.mxu0
      %v1437 = vadd.f32 0.0, %v1436
      %v1438 = vpop.f32.mrf.mxu0
      %v1439 = vadd.f32 0.0, %v1438
      %v1440 = vpop.f32.mrf.mxu0
      %v1441 = vadd.f32 0.0, %v1440
      %v1442 = vpop.f32.mrf.mxu0
      %v1443 = vadd.f32 0.0, %v1442
      %1444 = vmatprep.mubr.bf16.mxu0 %v1380
      %1445 = vmatmul.mubr.bf16.gmra.mxu0 %v1244
      %v1446 = vpop.f32.mrf.mxu0
      %v1447 = vadd.f32 0.0, %v1446
      %v1448 = vpop.f32.mrf.mxu0
      %v1449 = vadd.f32 0.0, %v1448
      %v1450 = vpop.f32.mrf.mxu0
      %v1451 = vpop.f32.mrf.mxu0
      %1452 = vdwg.mxu0
      %v1453 = vadd.f32 %v1163, %v1417
      %v1454 = vadd.f32 %v1165, %v1419
      %v1455 = vadd.f32 %v1167, %v1421
      %v1456 = vadd.f32 %v1169, %v1423
      %v1457 = vadd.f32 %v1173, %v1427
      %v1458 = vadd.f32 %v1175, %v1429
      %v1459 = vadd.f32 %v1177, %v1431
      %v1460 = vadd.f32 %v1179, %v1433
      %v1461 = vadd.f32 %v1183, %v1437
      %v1462 = vadd.f32 %v1185, %v1439
      %v1463 = vadd.f32 %v1187, %v1441
      %v1464 = vadd.f32 %v1189, %v1443
      %v1465 = vadd.f32 %v1193, %v1447
      %v1466 = vadd.f32 %v1195, %v1449
      %s1467 = scalar_lea.vmem %s4, 576
      %v1468 = vld [vmem:[%s1467] sm:$0xff]
      %v1469 = vld [vmem:[%s1467 + $0x8] sm:$0xff]
      %v1470 = vld [vmem:[%s1467 + $0x10] sm:$0xff]
      %v1471 = vld [vmem:[%s1467 + $0x18] sm:$0xff]
      %v1472 = vld [vmem:[%s1467 + $0x20] sm:$0xff]
      %v1473 = vld [vmem:[%s1467 + $0x28] sm:$0xff]
      %v1474 = vld [vmem:[%s1467 + $0x30] sm:$0xff]
      %v1475 = vld [vmem:[%s1467 + $0x38] sm:$0xff]
      %v1476 = vld [vmem:[%s1467 + $0x40] sm:$0xff]
      %v1477 = vld [vmem:[%s1467 + $0x48] sm:$0xff]
      %v1478 = vld [vmem:[%s1467 + $0x50] sm:$0xff]
      %v1479 = vld [vmem:[%s1467 + $0x58] sm:$0xff]
      %v1480 = vld [vmem:[%s1467 + $0x60] sm:$0xff]
      %v1481 = vld [vmem:[%s1467 + $0x68] sm:$0xff]
      %v1482 = vld [vmem:[%s1467 + $0x70] sm:$0xff]
      %v1483 = vld [vmem:[%s1467 + $0x78] sm:$0xff]
      %v1484 = vld [vmem:[%s1467 + $0x80] sm:$0xff]
      %v1485 = vld [vmem:[%s1467 + $0x88] sm:$0xff]
      %v1486 = vld [vmem:[%s1467 + $0x90] sm:$0xff]
      %v1487 = vld [vmem:[%s1467 + $0x98] sm:$0xff]
      %v1488 = vld [vmem:[%s1467 + $0xa0] sm:$0xff]
      %v1489 = vld [vmem:[%s1467 + $0xa8] sm:$0xff]
      %v1490 = vld [vmem:[%s1467 + $0xb0] sm:$0xff]
      %v1491 = vld [vmem:[%s1467 + $0xb8] sm:$0xff]
      %v1499 = vunpack.c.l.b16 %v428
      %v1500 = vunpack.c.h.b16 %v428
      %v1501 = vunpack.c.l.b16 %v430
      %v1502 = vunpack.c.h.b16 %v430
      %v1503 = vunpack.c.l.b16 %v432
      %v1504 = vunpack.c.h.b16 %v432
      %v1505 = vunpack.c.l.b16 %v434
      %v1506 = vunpack.c.h.b16 %v434
      %v1507 = vunpack.c.l.b16 %v436
      %v1508 = vunpack.c.h.b16 %v436
      %v1509 = vunpack.c.l.b16 %v438
      %v1510 = vunpack.c.h.b16 %v438
      %v1511 = vunpack.c.l.b16 %v440
      %v1512 = vunpack.c.h.b16 %v440
      %v1513 = vpack.c.b16 %v1501, %v1499
      %v1514 = vpack.c.b16 %v1502, %v1500
      %v1515 = vpack.c.b16 %v1505, %v1503
      %v1516 = vpack.c.b16 %v1506, %v1504
      %v1517 = vpack.c.b16 %v1509, %v1507
      %v1518 = vpack.c.b16 %v1510, %v1508
      %v1519 = vpack.c.b16 %v1511, %v1511
      %v1520 = vpack.c.b16 %v1512, %v1512
      %v1549 = vunpack.c.l.b16 %v1468
      %v1550 = vunpack.c.h.b16 %v1468
      %v1551 = vunpack.c.l.b16 %v1469
      %v1552 = vunpack.c.h.b16 %v1469
      %v1553 = vunpack.c.l.b16 %v1470
      %v1554 = vunpack.c.h.b16 %v1470
      %v1555 = vunpack.c.l.b16 %v1471
      %v1556 = vunpack.c.h.b16 %v1471
      %v1557 = vunpack.c.l.b16 %v1472
      %v1558 = vunpack.c.h.b16 %v1472
      %v1559 = vunpack.c.l.b16 %v1473
      %v1560 = vunpack.c.h.b16 %v1473
      %v1561 = vunpack.c.l.b16 %v1474
      %v1562 = vunpack.c.h.b16 %v1474
      %v1563 = vunpack.c.l.b16 %v1475
      %v1564 = vunpack.c.h.b16 %v1475
      %v1565 = vunpack.c.l.b16 %v1476
      %v1566 = vunpack.c.h.b16 %v1476
      %v1567 = vunpack.c.l.b16 %v1477
      %v1568 = vunpack.c.h.b16 %v1477
      %v1569 = vunpack.c.l.b16 %v1478
      %v1570 = vunpack.c.h.b16 %v1478
      %v1571 = vunpack.c.l.b16 %v1479
      %v1572 = vunpack.c.h.b16 %v1479
      %v1573 = vunpack.c.l.b16 %v1480
      %v1574 = vunpack.c.h.b16 %v1480
      %v1575 = vunpack.c.l.b16 %v1481
      %v1576 = vunpack.c.h.b16 %v1481
      %v1577 = vunpack.c.l.b16 %v1482
      %v1578 = vunpack.c.h.b16 %v1482
      %v1579 = vunpack.c.l.b16 %v1483
      %v1580 = vunpack.c.h.b16 %v1483
      %v1581 = vunpack.c.l.b16 %v1484
      %v1582 = vunpack.c.h.b16 %v1484
      %v1583 = vunpack.c.l.b16 %v1485
      %v1584 = vunpack.c.h.b16 %v1485
      %v1585 = vunpack.c.l.b16 %v1486
      %v1586 = vunpack.c.h.b16 %v1486
      %v1587 = vunpack.c.l.b16 %v1487
      %v1588 = vunpack.c.h.b16 %v1487
      %v1589 = vunpack.c.l.b16 %v1488
      %v1590 = vunpack.c.h.b16 %v1488
      %v1591 = vunpack.c.l.b16 %v1489
      %v1592 = vunpack.c.h.b16 %v1489
      %v1593 = vunpack.c.l.b16 %v1490
      %v1594 = vunpack.c.h.b16 %v1490
      %v1595 = vunpack.c.l.b16 %v1491
      %v1596 = vunpack.c.h.b16 %v1491
      %v1597 = vpack.c.b16 %v1551, %v1549
      %v1598 = vpack.c.b16 %v1552, %v1550
      %v1599 = vpack.c.b16 %v1555, %v1553
      %v1600 = vpack.c.b16 %v1556, %v1554
      %v1601 = vpack.c.b16 %v1559, %v1557
      %v1602 = vpack.c.b16 %v1560, %v1558
      %v1603 = vpack.c.b16 %v1563, %v1561
      %v1604 = vpack.c.b16 %v1564, %v1562
      %v1605 = vpack.c.b16 %v1567, %v1565
      %v1606 = vpack.c.b16 %v1568, %v1566
      %v1607 = vpack.c.b16 %v1571, %v1569
      %v1608 = vpack.c.b16 %v1572, %v1570
      %v1609 = vpack.c.b16 %v1575, %v1573
      %v1610 = vpack.c.b16 %v1576, %v1574
      %v1611 = vpack.c.b16 %v1579, %v1577
      %v1612 = vpack.c.b16 %v1580, %v1578
      %v1613 = vpack.c.b16 %v1583, %v1581
      %v1614 = vpack.c.b16 %v1584, %v1582
      %v1615 = vpack.c.b16 %v1587, %v1585
      %v1616 = vpack.c.b16 %v1588, %v1586
      %v1617 = vpack.c.b16 %v1591, %v1589
      %v1618 = vpack.c.b16 %v1592, %v1590
      %v1619 = vpack.c.b16 %v1595, %v1593
      %v1620 = vpack.c.b16 %v1596, %v1594
      %v1646 = vsel %vm879, %v1514, 0
      %v1649 = vsel %vm879, %v1516, 0
      %v1652 = vsel %vm879, %v1518, 0
      %v1655 = vsel %vm879, %v1520, 0
      %1657 = vmatprep.subr.bf16.mxu0 %v1612
      %1658 = vmatpush1.bf16.msra.mxu0 %v1611
      %1659 = vmatprep.subr.bf16.mxu0 %v1610
      %1660 = vmatpush1.bf16.msra.mxu0 %v1609
      %1661 = vmatprep.subr.bf16.mxu0 %v1608
      %1662 = vmatpush1.bf16.msra.mxu0 %v1607
      %1663 = vmatprep.subr.bf16.mxu0 %v1606
      %1664 = vmatpush1.bf16.msra.mxu0 %v1605
      %1665 = vmatprep.subr.bf16.mxu0 %v1604
      %1666 = vmatpush1.bf16.msra.mxu0 %v1603
      %1667 = vmatprep.subr.bf16.mxu0 %v1602
      %1668 = vmatpush1.bf16.msra.mxu0 %v1601
      %1669 = vmatprep.subr.bf16.mxu0 %v1600
      %1670 = vmatpush1.bf16.msra.mxu0 %v1599
      %1671 = vmatprep.subr.bf16.mxu0 %v1598
      %1672 = vmatpush1.bf16.msra.mxu0 %v1597
      %1673 = vmatprep.subr.bf16.mxu0 0
      %1674 = vmatpush2.bf16.msra.mxu0 0
      %1675 = vmatprep.subr.bf16.mxu0 0
      %1676 = vmatpush2.bf16.msra.mxu0 0
      %1677 = vmatprep.subr.bf16.mxu0 0
      %1678 = vmatpush2.bf16.msra.mxu0 0
      %1679 = vmatprep.subr.bf16.mxu0 0
      %1680 = vmatpush2.bf16.msra.mxu0 0
      %1681 = vmatprep.subr.bf16.mxu0 %v1620
      %1682 = vmatpush2.bf16.msra.mxu0 %v1619
      %1683 = vmatprep.subr.bf16.mxu0 %v1618
      %1684 = vmatpush2.bf16.msra.mxu0 %v1617
      %1685 = vmatprep.subr.bf16.mxu0 %v1616
      %1686 = vmatpush2.bf16.msra.mxu0 %v1615
      %1687 = vmatprep.subr.bf16.mxu0 %v1614
      %1688 = vmatpush2.bf16.msra.mxu0 %v1613
      %1689 = vmatprep.mubr.bf16.mxu0 %v1646
      %1690 = vmatmul.mubr.bf16.gmra.mxu0 %v1513
      %v1691 = vpop.f32.mrf.mxu0
      %v1692 = vadd.f32 0.0, %v1691
      %v1693 = vpop.f32.mrf.mxu0
      %v1694 = vadd.f32 0.0, %v1693
      %v1695 = vpop.f32.mrf.mxu0
      %v1696 = vadd.f32 0.0, %v1695
      %v1697 = vpop.f32.mrf.mxu0
      %v1698 = vadd.f32 0.0, %v1697
      %1699 = vmatprep.mubr.bf16.mxu0 %v1649
      %1700 = vmatmul.mubr.bf16.gmra.mxu0 %v1515
      %v1701 = vpop.f32.mrf.mxu0
      %v1702 = vadd.f32 0.0, %v1701
      %v1703 = vpop.f32.mrf.mxu0
      %v1704 = vadd.f32 0.0, %v1703
      %v1705 = vpop.f32.mrf.mxu0
      %v1706 = vadd.f32 0.0, %v1705
      %v1707 = vpop.f32.mrf.mxu0
      %v1708 = vadd.f32 0.0, %v1707
      %1709 = vmatprep.mubr.bf16.mxu0 %v1652
      %1710 = vmatmul.mubr.bf16.gmra.mxu0 %v1517
      %v1711 = vpop.f32.mrf.mxu0
      %v1712 = vadd.f32 0.0, %v1711
      %v1713 = vpop.f32.mrf.mxu0
      %v1714 = vadd.f32 0.0, %v1713
      %v1715 = vpop.f32.mrf.mxu0
      %v1716 = vadd.f32 0.0, %v1715
      %v1717 = vpop.f32.mrf.mxu0
      %v1718 = vadd.f32 0.0, %v1717
      %1719 = vmatprep.mubr.bf16.mxu0 %v1655
      %1720 = vmatmul.mubr.bf16.gmra.mxu0 %v1519
      %v1721 = vpop.f32.mrf.mxu0
      %v1722 = vadd.f32 0.0, %v1721
      %v1723 = vpop.f32.mrf.mxu0
      %v1724 = vadd.f32 0.0, %v1723
      %v1725 = vpop.f32.mrf.mxu0
      %v1726 = vpop.f32.mrf.mxu0
      %1727 = vdwg.mxu0
      %v1728 = vadd.f32 %v1453, %v1692
      %v1729 = vadd.f32 %v1454, %v1694
      %v1730 = vadd.f32 %v1455, %v1696
      %v1731 = vadd.f32 %v1456, %v1698
      %v1732 = vadd.f32 %v1457, %v1702
      %v1733 = vadd.f32 %v1458, %v1704
      %v1734 = vadd.f32 %v1459, %v1706
      %v1735 = vadd.f32 %v1460, %v1708
      %v1736 = vadd.f32 %v1461, %v1712
      %v1737 = vadd.f32 %v1462, %v1714
      %v1738 = vadd.f32 %v1463, %v1716
      %v1739 = vadd.f32 %v1464, %v1718
      %v1740 = vadd.f32 %v1465, %v1722
      %v1741 = vadd.f32 %v1466, %v1724
      %s1742 = scalar_lea.vmem %s4, 768
      %v1743 = vld [vmem:[%s1742] sm:$0xff]
      %v1744 = vld [vmem:[%s1742 + $0x8] sm:$0xff]
      %v1745 = vld [vmem:[%s1742 + $0x10] sm:$0xff]
      %v1746 = vld [vmem:[%s1742 + $0x18] sm:$0xff]
      %v1747 = vld [vmem:[%s1742 + $0x20] sm:$0xff]
      %v1748 = vld [vmem:[%s1742 + $0x28] sm:$0xff]
      %v1749 = vld [vmem:[%s1742 + $0x30] sm:$0xff]
      %v1750 = vld [vmem:[%s1742 + $0x38] sm:$0xff]
      %v1751 = vld [vmem:[%s1742 + $0x40] sm:$0xff]
      %v1752 = vld [vmem:[%s1742 + $0x48] sm:$0xff]
      %v1753 = vld [vmem:[%s1742 + $0x50] sm:$0xff]
      %v1754 = vld [vmem:[%s1742 + $0x58] sm:$0xff]
      %v1755 = vld [vmem:[%s1742 + $0x60] sm:$0xff]
      %v1756 = vld [vmem:[%s1742 + $0x68] sm:$0xff]
      %v1757 = vld [vmem:[%s1742 + $0x70] sm:$0xff]
      %v1758 = vld [vmem:[%s1742 + $0x78] sm:$0xff]
      %v1759 = vld [vmem:[%s1742 + $0x80] sm:$0xff]
      %v1760 = vld [vmem:[%s1742 + $0x88] sm:$0xff]
      %v1761 = vld [vmem:[%s1742 + $0x90] sm:$0xff]
      %v1762 = vld [vmem:[%s1742 + $0x98] sm:$0xff]
      %v1763 = vld [vmem:[%s1742 + $0xa0] sm:$0xff]
      %v1764 = vld [vmem:[%s1742 + $0xa8] sm:$0xff]
      %v1765 = vld [vmem:[%s1742 + $0xb0] sm:$0xff]
      %v1766 = vld [vmem:[%s1742 + $0xb8] sm:$0xff]
      %v1774 = vunpack.c.l.b16 %v442
      %v1775 = vunpack.c.h.b16 %v442
      %v1776 = vunpack.c.l.b16 %v443
      %v1777 = vunpack.c.h.b16 %v443
      %v1778 = vunpack.c.l.b16 %v444
      %v1779 = vunpack.c.h.b16 %v444
      %v1780 = vunpack.c.l.b16 %v445
      %v1781 = vunpack.c.h.b16 %v445
      %v1782 = vunpack.c.l.b16 %v446
      %v1783 = vunpack.c.h.b16 %v446
      %v1784 = vunpack.c.l.b16 %v447
      %v1785 = vunpack.c.h.b16 %v447
      %v1786 = vunpack.c.l.b16 %v448
      %v1787 = vunpack.c.h.b16 %v448
      %v1788 = vpack.c.b16 %v1776, %v1774
      %v1789 = vpack.c.b16 %v1777, %v1775
      %v1790 = vpack.c.b16 %v1780, %v1778
      %v1791 = vpack.c.b16 %v1781, %v1779
      %v1792 = vpack.c.b16 %v1784, %v1782
      %v1793 = vpack.c.b16 %v1785, %v1783
      %v1794 = vpack.c.b16 %v1786, %v1786
      %v1795 = vpack.c.b16 %v1787, %v1787
      %v1824 = vunpack.c.l.b16 %v1743
      %v1825 = vunpack.c.h.b16 %v1743
      %v1826 = vunpack.c.l.b16 %v1744
      %v1827 = vunpack.c.h.b16 %v1744
      %v1828 = vunpack.c.l.b16 %v1745
      %v1829 = vunpack.c.h.b16 %v1745
      %v1830 = vunpack.c.l.b16 %v1746
      %v1831 = vunpack.c.h.b16 %v1746
      %v1832 = vunpack.c.l.b16 %v1747
      %v1833 = vunpack.c.h.b16 %v1747
      %v1834 = vunpack.c.l.b16 %v1748
      %v1835 = vunpack.c.h.b16 %v1748
      %v1836 = vunpack.c.l.b16 %v1749
      %v1837 = vunpack.c.h.b16 %v1749
      %v1838 = vunpack.c.l.b16 %v1750
      %v1839 = vunpack.c.h.b16 %v1750
      %v1840 = vunpack.c.l.b16 %v1751
      %v1841 = vunpack.c.h.b16 %v1751
      %v1842 = vunpack.c.l.b16 %v1752
      %v1843 = vunpack.c.h.b16 %v1752
      %v1844 = vunpack.c.l.b16 %v1753
      %v1845 = vunpack.c.h.b16 %v1753
      %v1846 = vunpack.c.l.b16 %v1754
      %v1847 = vunpack.c.h.b16 %v1754
      %v1848 = vunpack.c.l.b16 %v1755
      %v1849 = vunpack.c.h.b16 %v1755
      %v1850 = vunpack.c.l.b16 %v1756
      %v1851 = vunpack.c.h.b16 %v1756
      %v1852 = vunpack.c.l.b16 %v1757
      %v1853 = vunpack.c.h.b16 %v1757
      %v1854 = vunpack.c.l.b16 %v1758
      %v1855 = vunpack.c.h.b16 %v1758
      %v1856 = vunpack.c.l.b16 %v1759
      %v1857 = vunpack.c.h.b16 %v1759
      %v1858 = vunpack.c.l.b16 %v1760
      %v1859 = vunpack.c.h.b16 %v1760
      %v1860 = vunpack.c.l.b16 %v1761
      %v1861 = vunpack.c.h.b16 %v1761
      %v1862 = vunpack.c.l.b16 %v1762
      %v1863 = vunpack.c.h.b16 %v1762
      %v1864 = vunpack.c.l.b16 %v1763
      %v1865 = vunpack.c.h.b16 %v1763
      %v1866 = vunpack.c.l.b16 %v1764
      %v1867 = vunpack.c.h.b16 %v1764
      %v1868 = vunpack.c.l.b16 %v1765
      %v1869 = vunpack.c.h.b16 %v1765
      %v1870 = vunpack.c.l.b16 %v1766
      %v1871 = vunpack.c.h.b16 %v1766
      %v1872 = vpack.c.b16 %v1826, %v1824
      %v1873 = vpack.c.b16 %v1827, %v1825
      %v1874 = vpack.c.b16 %v1830, %v1828
      %v1875 = vpack.c.b16 %v1831, %v1829
      %v1876 = vpack.c.b16 %v1834, %v1832
      %v1877 = vpack.c.b16 %v1835, %v1833
      %v1878 = vpack.c.b16 %v1838, %v1836
      %v1879 = vpack.c.b16 %v1839, %v1837
      %v1880 = vpack.c.b16 %v1842, %v1840
      %v1881 = vpack.c.b16 %v1843, %v1841
      %v1882 = vpack.c.b16 %v1846, %v1844
      %v1883 = vpack.c.b16 %v1847, %v1845
      %v1884 = vpack.c.b16 %v1850, %v1848
      %v1885 = vpack.c.b16 %v1851, %v1849
      %v1886 = vpack.c.b16 %v1854, %v1852
      %v1887 = vpack.c.b16 %v1855, %v1853
      %v1888 = vpack.c.b16 %v1858, %v1856
      %v1889 = vpack.c.b16 %v1859, %v1857
      %v1890 = vpack.c.b16 %v1862, %v1860
      %v1891 = vpack.c.b16 %v1863, %v1861
      %v1892 = vpack.c.b16 %v1866, %v1864
      %v1893 = vpack.c.b16 %v1867, %v1865
      %v1894 = vpack.c.b16 %v1870, %v1868
      %v1895 = vpack.c.b16 %v1871, %v1869
      %v1921 = vsel %vm879, %v1789, 0
      %v1924 = vsel %vm879, %v1791, 0
      %v1927 = vsel %vm879, %v1793, 0
      %v1930 = vsel %vm879, %v1795, 0
      %1932 = vmatprep.subr.bf16.mxu0 %v1887
      %1933 = vmatpush1.bf16.msra.mxu0 %v1886
      %1934 = vmatprep.subr.bf16.mxu0 %v1885
      %1935 = vmatpush1.bf16.msra.mxu0 %v1884
      %1936 = vmatprep.subr.bf16.mxu0 %v1883
      %1937 = vmatpush1.bf16.msra.mxu0 %v1882
      %1938 = vmatprep.subr.bf16.mxu0 %v1881
      %1939 = vmatpush1.bf16.msra.mxu0 %v1880
      %1940 = vmatprep.subr.bf16.mxu0 %v1879
      %1941 = vmatpush1.bf16.msra.mxu0 %v1878
      %1942 = vmatprep.subr.bf16.mxu0 %v1877
      %1943 = vmatpush1.bf16.msra.mxu0 %v1876
      %1944 = vmatprep.subr.bf16.mxu0 %v1875
      %1945 = vmatpush1.bf16.msra.mxu0 %v1874
      %1946 = vmatprep.subr.bf16.mxu0 %v1873
      %1947 = vmatpush1.bf16.msra.mxu0 %v1872
      %1948 = vmatprep.subr.bf16.mxu0 0
      %1949 = vmatpush2.bf16.msra.mxu0 0
      %1950 = vmatprep.subr.bf16.mxu0 0
      %1951 = vmatpush2.bf16.msra.mxu0 0
      %1952 = vmatprep.subr.bf16.mxu0 0
      %1953 = vmatpush2.bf16.msra.mxu0 0
      %1954 = vmatprep.subr.bf16.mxu0 0
      %1955 = vmatpush2.bf16.msra.mxu0 0
      %1956 = vmatprep.subr.bf16.mxu0 %v1895
      %1957 = vmatpush2.bf16.msra.mxu0 %v1894
      %1958 = vmatprep.subr.bf16.mxu0 %v1893
      %1959 = vmatpush2.bf16.msra.mxu0 %v1892
      %1960 = vmatprep.subr.bf16.mxu0 %v1891
      %1961 = vmatpush2.bf16.msra.mxu0 %v1890
      %1962 = vmatprep.subr.bf16.mxu0 %v1889
      %1963 = vmatpush2.bf16.msra.mxu0 %v1888
      %1964 = vmatprep.mubr.bf16.mxu0 %v1921
      %1965 = vmatmul.mubr.bf16.gmra.mxu0 %v1788
      %v1966 = vpop.f32.mrf.mxu0
      %v1967 = vadd.f32 0.0, %v1966
      %v1968 = vpop.f32.mrf.mxu0
      %v1969 = vadd.f32 0.0, %v1968
      %v1970 = vpop.f32.mrf.mxu0
      %v1971 = vadd.f32 0.0, %v1970
      %v1972 = vpop.f32.mrf.mxu0
      %v1973 = vadd.f32 0.0, %v1972
      %1974 = vmatprep.mubr.bf16.mxu0 %v1924
      %1975 = vmatmul.mubr.bf16.gmra.mxu0 %v1790
      %v1976 = vpop.f32.mrf.mxu0
      %v1977 = vadd.f32 0.0, %v1976
      %v1978 = vpop.f32.mrf.mxu0
      %v1979 = vadd.f32 0.0, %v1978
      %v1980 = vpop.f32.mrf.mxu0
      %v1981 = vadd.f32 0.0, %v1980
      %v1982 = vpop.f32.mrf.mxu0
      %v1983 = vadd.f32 0.0, %v1982
      %1984 = vmatprep.mubr.bf16.mxu0 %v1927
      %1985 = vmatmul.mubr.bf16.gmra.mxu0 %v1792
      %v1986 = vpop.f32.mrf.mxu0
      %v1987 = vadd.f32 0.0, %v1986
      %v1988 = vpop.f32.mrf.mxu0
      %v1989 = vadd.f32 0.0, %v1988
      %v1990 = vpop.f32.mrf.mxu0
      %v1991 = vadd.f32 0.0, %v1990
      %v1992 = vpop.f32.mrf.mxu0
      %v1993 = vadd.f32 0.0, %v1992
      %1994 = vmatprep.mubr.bf16.mxu0 %v1930
      %1995 = vmatmul.mubr.bf16.gmra.mxu0 %v1794
      %v1996 = vpop.f32.mrf.mxu0
      %v1997 = vadd.f32 0.0, %v1996
      %v1998 = vpop.f32.mrf.mxu0
      %v1999 = vadd.f32 0.0, %v1998
      %v2000 = vpop.f32.mrf.mxu0
      %v2001 = vpop.f32.mrf.mxu0
      %2002 = vdwg.mxu0
      %v2003 = vadd.f32 %v1728, %v1967
      %v2004 = vadd.f32 %v1729, %v1969
      %v2005 = vadd.f32 %v1730, %v1971
      %v2006 = vadd.f32 %v1731, %v1973
      %v2007 = vadd.f32 %v1732, %v1977
      %v2008 = vadd.f32 %v1733, %v1979
      %v2009 = vadd.f32 %v1734, %v1981
      %v2010 = vadd.f32 %v1735, %v1983
      %v2011 = vadd.f32 %v1736, %v1987
      %v2012 = vadd.f32 %v1737, %v1989
      %v2013 = vadd.f32 %v1738, %v1991
      %v2014 = vadd.f32 %v1739, %v1993
      %v2015 = vadd.f32 %v1740, %v1997
      %v2016 = vadd.f32 %v1741, %v1999
      %s2017 = scalar_lea.vmem %s4, 960
      %v2018 = vld [vmem:[%s2017] sm:$0xff]
      %v2019 = vld [vmem:[%s2017 + $0x8] sm:$0xff]
      %v2020 = vld [vmem:[%s2017 + $0x10] sm:$0xff]
      %v2021 = vld [vmem:[%s2017 + $0x18] sm:$0xff]
      %v2022 = vld [vmem:[%s2017 + $0x20] sm:$0xff]
      %v2023 = vld [vmem:[%s2017 + $0x28] sm:$0xff]
      %v2024 = vld [vmem:[%s2017 + $0x30] sm:$0xff]
      %v2025 = vld [vmem:[%s2017 + $0x38] sm:$0xff]
      %v2026 = vld [vmem:[%s2017 + $0x40] sm:$0xff]
      %v2027 = vld [vmem:[%s2017 + $0x48] sm:$0xff]
      %v2028 = vld [vmem:[%s2017 + $0x50] sm:$0xff]
      %v2029 = vld [vmem:[%s2017 + $0x58] sm:$0xff]
      %v2030 = vld [vmem:[%s2017 + $0x60] sm:$0xff]
      %v2031 = vld [vmem:[%s2017 + $0x68] sm:$0xff]
      %v2032 = vld [vmem:[%s2017 + $0x70] sm:$0xff]
      %v2033 = vld [vmem:[%s2017 + $0x78] sm:$0xff]
      %v2034 = vld [vmem:[%s2017 + $0x80] sm:$0xff]
      %v2035 = vld [vmem:[%s2017 + $0x88] sm:$0xff]
      %v2036 = vld [vmem:[%s2017 + $0x90] sm:$0xff]
      %v2037 = vld [vmem:[%s2017 + $0x98] sm:$0xff]
      %v2038 = vld [vmem:[%s2017 + $0xa0] sm:$0xff]
      %v2039 = vld [vmem:[%s2017 + $0xa8] sm:$0xff]
      %v2040 = vld [vmem:[%s2017 + $0xb0] sm:$0xff]
      %v2041 = vld [vmem:[%s2017 + $0xb8] sm:$0xff]
      %v2042 = vunpack.c.l.b16 %v570
      %v2043 = vunpack.c.h.b16 %v570
      %v2044 = vunpack.c.l.b16 %v584
      %v2045 = vunpack.c.h.b16 %v584
      %v2046 = vunpack.c.l.b16 %v598
      %v2047 = vunpack.c.h.b16 %v598
      %v2048 = vunpack.c.l.b16 %v612
      %v2049 = vunpack.c.h.b16 %v612
      %v2050 = vunpack.c.l.b16 %v626
      %v2051 = vunpack.c.h.b16 %v626
      %v2052 = vunpack.c.l.b16 %v640
      %v2053 = vunpack.c.h.b16 %v640
      %v2054 = vunpack.c.l.b16 %v654
      %v2055 = vunpack.c.h.b16 %v654
      %v2056 = vpack.c.b16 %v2044, %v2042
      %v2057 = vpack.c.b16 %v2045, %v2043
      %v2058 = vpack.c.b16 %v2048, %v2046
      %v2059 = vpack.c.b16 %v2049, %v2047
      %v2060 = vpack.c.b16 %v2052, %v2050
      %v2061 = vpack.c.b16 %v2053, %v2051
      %v2062 = vpack.c.b16 %v2054, %v2054
      %v2063 = vpack.c.b16 %v2055, %v2055
      %v2092 = vunpack.c.l.b16 %v2018
      %v2093 = vunpack.c.h.b16 %v2018
      %v2094 = vunpack.c.l.b16 %v2019
      %v2095 = vunpack.c.h.b16 %v2019
      %v2096 = vunpack.c.l.b16 %v2020
      %v2097 = vunpack.c.h.b16 %v2020
      %v2098 = vunpack.c.l.b16 %v2021
      %v2099 = vunpack.c.h.b16 %v2021
      %v2100 = vunpack.c.l.b16 %v2022
      %v2101 = vunpack.c.h.b16 %v2022
      %v2102 = vunpack.c.l.b16 %v2023
      %v2103 = vunpack.c.h.b16 %v2023
      %v2104 = vunpack.c.l.b16 %v2024
      %v2105 = vunpack.c.h.b16 %v2024
      %v2106 = vunpack.c.l.b16 %v2025
      %v2107 = vunpack.c.h.b16 %v2025
      %v2108 = vunpack.c.l.b16 %v2026
      %v2109 = vunpack.c.h.b16 %v2026
      %v2110 = vunpack.c.l.b16 %v2027
      %v2111 = vunpack.c.h.b16 %v2027
      %v2112 = vunpack.c.l.b16 %v2028
      %v2113 = vunpack.c.h.b16 %v2028
      %v2114 = vunpack.c.l.b16 %v2029
      %v2115 = vunpack.c.h.b16 %v2029
      %v2116 = vunpack.c.l.b16 %v2030
      %v2117 = vunpack.c.h.b16 %v2030
      %v2118 = vunpack.c.l.b16 %v2031
      %v2119 = vunpack.c.h.b16 %v2031
      %v2120 = vunpack.c.l.b16 %v2032
      %v2121 = vunpack.c.h.b16 %v2032
      %v2122 = vunpack.c.l.b16 %v2033
      %v2123 = vunpack.c.h.b16 %v2033
      %v2124 = vunpack.c.l.b16 %v2034
      %v2125 = vunpack.c.h.b16 %v2034
      %v2126 = vunpack.c.l.b16 %v2035
      %v2127 = vunpack.c.h.b16 %v2035
      %v2128 = vunpack.c.l.b16 %v2036
      %v2129 = vunpack.c.h.b16 %v2036
      %v2130 = vunpack.c.l.b16 %v2037
      %v2131 = vunpack.c.h.b16 %v2037
      %v2132 = vunpack.c.l.b16 %v2038
      %v2133 = vunpack.c.h.b16 %v2038
      %v2134 = vunpack.c.l.b16 %v2039
      %v2135 = vunpack.c.h.b16 %v2039
      %v2136 = vunpack.c.l.b16 %v2040
      %v2137 = vunpack.c.h.b16 %v2040
      %v2138 = vunpack.c.l.b16 %v2041
      %v2139 = vunpack.c.h.b16 %v2041
      %v2140 = vpack.c.b16 %v2094, %v2092
      %v2141 = vpack.c.b16 %v2095, %v2093
      %v2142 = vpack.c.b16 %v2098, %v2096
      %v2143 = vpack.c.b16 %v2099, %v2097
      %v2144 = vpack.c.b16 %v2102, %v2100
      %v2145 = vpack.c.b16 %v2103, %v2101
      %v2146 = vpack.c.b16 %v2106, %v2104
      %v2147 = vpack.c.b16 %v2107, %v2105
      %v2148 = vpack.c.b16 %v2110, %v2108
      %v2149 = vpack.c.b16 %v2111, %v2109
      %v2150 = vpack.c.b16 %v2114, %v2112
      %v2151 = vpack.c.b16 %v2115, %v2113
      %v2152 = vpack.c.b16 %v2118, %v2116
      %v2153 = vpack.c.b16 %v2119, %v2117
      %v2154 = vpack.c.b16 %v2122, %v2120
      %v2155 = vpack.c.b16 %v2123, %v2121
      %v2156 = vpack.c.b16 %v2126, %v2124
      %v2157 = vpack.c.b16 %v2127, %v2125
      %v2158 = vpack.c.b16 %v2130, %v2128
      %v2159 = vpack.c.b16 %v2131, %v2129
      %v2160 = vpack.c.b16 %v2134, %v2132
      %v2161 = vpack.c.b16 %v2135, %v2133
      %v2162 = vpack.c.b16 %v2138, %v2136
      %v2163 = vpack.c.b16 %v2139, %v2137
      %v2189 = vsel %vm879, %v2057, 0
      %v2192 = vsel %vm879, %v2059, 0
      %v2195 = vsel %vm879, %v2061, 0
      %v2198 = vsel %vm879, %v2063, 0
      %2200 = vmatprep.subr.bf16.mxu0 %v2155
      %2201 = vmatpush1.bf16.msra.mxu0 %v2154
      %2202 = vmatprep.subr.bf16.mxu0 %v2153
      %2203 = vmatpush1.bf16.msra.mxu0 %v2152
      %2204 = vmatprep.subr.bf16.mxu0 %v2151
      %2205 = vmatpush1.bf16.msra.mxu0 %v2150
      %2206 = vmatprep.subr.bf16.mxu0 %v2149
      %2207 = vmatpush1.bf16.msra.mxu0 %v2148
      %2208 = vmatprep.subr.bf16.mxu0 %v2147
      %2209 = vmatpush1.bf16.msra.mxu0 %v2146
      %2210 = vmatprep.subr.bf16.mxu0 %v2145
      %2211 = vmatpush1.bf16.msra.mxu0 %v2144
      %2212 = vmatprep.subr.bf16.mxu0 %v2143
      %2213 = vmatpush1.bf16.msra.mxu0 %v2142
      %2214 = vmatprep.subr.bf16.mxu0 %v2141
      %2215 = vmatpush1.bf16.msra.mxu0 %v2140
      %2216 = vmatprep.subr.bf16.mxu0 0
      %2217 = vmatpush2.bf16.msra.mxu0 0
      %2218 = vmatprep.subr.bf16.mxu0 0
      %2219 = vmatpush2.bf16.msra.mxu0 0
      %2220 = vmatprep.subr.bf16.mxu0 0
      %2221 = vmatpush2.bf16.msra.mxu0 0
      %2222 = vmatprep.subr.bf16.mxu0 0
      %2223 = vmatpush2.bf16.msra.mxu0 0
      %2224 = vmatprep.subr.bf16.mxu0 %v2163
      %2225 = vmatpush2.bf16.msra.mxu0 %v2162
      %2226 = vmatprep.subr.bf16.mxu0 %v2161
      %2227 = vmatpush2.bf16.msra.mxu0 %v2160
      %2228 = vmatprep.subr.bf16.mxu0 %v2159
      %2229 = vmatpush2.bf16.msra.mxu0 %v2158
      %2230 = vmatprep.subr.bf16.mxu0 %v2157
      %2231 = vmatpush2.bf16.msra.mxu0 %v2156
      %2232 = vmatprep.mubr.bf16.mxu0 %v2189
      %2233 = vmatmul.mubr.bf16.gmra.mxu0 %v2056
      %v2234 = vpop.f32.mrf.mxu0
      %v2235 = vadd.f32 0.0, %v2234
      %v2236 = vpop.f32.mrf.mxu0
      %v2237 = vadd.f32 0.0, %v2236
      %v2238 = vpop.f32.mrf.mxu0
      %v2239 = vadd.f32 0.0, %v2238
      %v2240 = vpop.f32.mrf.mxu0
      %v2241 = vadd.f32 0.0, %v2240
      %2242 = vmatprep.mubr.bf16.mxu0 %v2192
      %2243 = vmatmul.mubr.bf16.gmra.mxu0 %v2058
      %v2244 = vpop.f32.mrf.mxu0
      %v2245 = vadd.f32 0.0, %v2244
      %v2246 = vpop.f32.mrf.mxu0
      %v2247 = vadd.f32 0.0, %v2246
      %v2248 = vpop.f32.mrf.mxu0
      %v2249 = vadd.f32 0.0, %v2248
      %v2250 = vpop.f32.mrf.mxu0
      %v2251 = vadd.f32 0.0, %v2250
      %2252 = vmatprep.mubr.bf16.mxu0 %v2195
      %2253 = vmatmul.mubr.bf16.gmra.mxu0 %v2060
      %v2254 = vpop.f32.mrf.mxu0
      %v2255 = vadd.f32 0.0, %v2254
      %v2256 = vpop.f32.mrf.mxu0
      %v2257 = vadd.f32 0.0, %v2256
      %v2258 = vpop.f32.mrf.mxu0
      %v2259 = vadd.f32 0.0, %v2258
      %v2260 = vpop.f32.mrf.mxu0
      %v2261 = vadd.f32 0.0, %v2260
      %2262 = vmatprep.mubr.bf16.mxu0 %v2198
      %2263 = vmatmul.mubr.bf16.gmra.mxu0 %v2062
      %v2264 = vpop.f32.mrf.mxu0
      %v2265 = vadd.f32 0.0, %v2264
      %v2266 = vpop.f32.mrf.mxu0
      %v2267 = vadd.f32 0.0, %v2266
      %v2268 = vpop.f32.mrf.mxu0
      %v2269 = vpop.f32.mrf.mxu0
      %2270 = vdwg.mxu0
      %v2271 = vadd.f32 %v2003, %v2235
      %v2272 = vadd.f32 %v2004, %v2237
      %v2273 = vadd.f32 %v2005, %v2239
      %v2274 = vadd.f32 %v2006, %v2241
      %v2275 = vadd.f32 %v2007, %v2245
      %v2276 = vadd.f32 %v2008, %v2247
      %v2277 = vadd.f32 %v2009, %v2249
      %v2278 = vadd.f32 %v2010, %v2251
      %v2279 = vadd.f32 %v2011, %v2255
      %v2280 = vadd.f32 %v2012, %v2257
      %v2281 = vadd.f32 %v2013, %v2259
      %v2282 = vadd.f32 %v2014, %v2261
      %v2283 = vadd.f32 %v2015, %v2265
      %v2284 = vadd.f32 %v2016, %v2267
      %s2285 = scalar_lea.vmem %s4, 1152
      %v2286 = vld [vmem:[%s2285] sm:$0xff]
      %v2287 = vld [vmem:[%s2285 + $0x8] sm:$0xff]
      %v2288 = vld [vmem:[%s2285 + $0x10] sm:$0xff]
      %v2289 = vld [vmem:[%s2285 + $0x18] sm:$0xff]
      %v2290 = vld [vmem:[%s2285 + $0x20] sm:$0xff]
      %v2291 = vld [vmem:[%s2285 + $0x28] sm:$0xff]
      %v2292 = vld [vmem:[%s2285 + $0x30] sm:$0xff]
      %v2293 = vld [vmem:[%s2285 + $0x38] sm:$0xff]
      %v2294 = vld [vmem:[%s2285 + $0x40] sm:$0xff]
      %v2295 = vld [vmem:[%s2285 + $0x48] sm:$0xff]
      %v2296 = vld [vmem:[%s2285 + $0x50] sm:$0xff]
      %v2297 = vld [vmem:[%s2285 + $0x58] sm:$0xff]
      %v2298 = vld [vmem:[%s2285 + $0x60] sm:$0xff]
      %v2299 = vld [vmem:[%s2285 + $0x68] sm:$0xff]
      %v2300 = vld [vmem:[%s2285 + $0x70] sm:$0xff]
      %v2301 = vld [vmem:[%s2285 + $0x78] sm:$0xff]
      %v2302 = vld [vmem:[%s2285 + $0x80] sm:$0xff]
      %v2303 = vld [vmem:[%s2285 + $0x88] sm:$0xff]
      %v2304 = vld [vmem:[%s2285 + $0x90] sm:$0xff]
      %v2305 = vld [vmem:[%s2285 + $0x98] sm:$0xff]
      %v2306 = vld [vmem:[%s2285 + $0xa0] sm:$0xff]
      %v2307 = vld [vmem:[%s2285 + $0xa8] sm:$0xff]
      %v2308 = vld [vmem:[%s2285 + $0xb0] sm:$0xff]
      %v2309 = vld [vmem:[%s2285 + $0xb8] sm:$0xff]
      %v2311 = vunpack.c.l.b16 %v418
      %v2312 = vunpack.c.h.b16 %v418
      %v2313 = vpack.c.b16 %v974, %v972
      %v2314 = vpack.c.b16 %v975, %v973
      %v2315 = vpack.c.b16 %v978, %v976
      %v2316 = vpack.c.b16 %v979, %v977
      %v2317 = vpack.c.b16 %v982, %v980
      %v2318 = vpack.c.b16 %v983, %v981
      %v2319 = vpack.c.b16 %v2311, %v2311
      %v2320 = vpack.c.b16 %v2312, %v2312
      %v2349 = vunpack.c.l.b16 %v2286
      %v2350 = vunpack.c.h.b16 %v2286
      %v2351 = vunpack.c.l.b16 %v2287
      %v2352 = vunpack.c.h.b16 %v2287
      %v2353 = vunpack.c.l.b16 %v2288
      %v2354 = vunpack.c.h.b16 %v2288
      %v2355 = vunpack.c.l.b16 %v2289
      %v2356 = vunpack.c.h.b16 %v2289
      %v2357 = vunpack.c.l.b16 %v2290
      %v2358 = vunpack.c.h.b16 %v2290
      %v2359 = vunpack.c.l.b16 %v2291
      %v2360 = vunpack.c.h.b16 %v2291
      %v2361 = vunpack.c.l.b16 %v2292
      %v2362 = vunpack.c.h.b16 %v2292
      %v2363 = vunpack.c.l.b16 %v2293
      %v2364 = vunpack.c.h.b16 %v2293
      %v2365 = vunpack.c.l.b16 %v2294
      %v2366 = vunpack.c.h.b16 %v2294
      %v2367 = vunpack.c.l.b16 %v2295
      %v2368 = vunpack.c.h.b16 %v2295
      %v2369 = vunpack.c.l.b16 %v2296
      %v2370 = vunpack.c.h.b16 %v2296
      %v2371 = vunpack.c.l.b16 %v2297
      %v2372 = vunpack.c.h.b16 %v2297
      %v2373 = vunpack.c.l.b16 %v2298
      %v2374 = vunpack.c.h.b16 %v2298
      %v2375 = vunpack.c.l.b16 %v2299
      %v2376 = vunpack.c.h.b16 %v2299
      %v2377 = vunpack.c.l.b16 %v2300
      %v2378 = vunpack.c.h.b16 %v2300
      %v2379 = vunpack.c.l.b16 %v2301
      %v2380 = vunpack.c.h.b16 %v2301
      %v2381 = vunpack.c.l.b16 %v2302
      %v2382 = vunpack.c.h.b16 %v2302
      %v2383 = vunpack.c.l.b16 %v2303
      %v2384 = vunpack.c.h.b16 %v2303
      %v2385 = vunpack.c.l.b16 %v2304
      %v2386 = vunpack.c.h.b16 %v2304
      %v2387 = vunpack.c.l.b16 %v2305
      %v2388 = vunpack.c.h.b16 %v2305
      %v2389 = vunpack.c.l.b16 %v2306
      %v2390 = vunpack.c.h.b16 %v2306
      %v2391 = vunpack.c.l.b16 %v2307
      %v2392 = vunpack.c.h.b16 %v2307
      %v2393 = vunpack.c.l.b16 %v2308
      %v2394 = vunpack.c.h.b16 %v2308
      %v2395 = vunpack.c.l.b16 %v2309
      %v2396 = vunpack.c.h.b16 %v2309
      %v2397 = vpack.c.b16 %v2351, %v2349
      %v2398 = vpack.c.b16 %v2352, %v2350
      %v2399 = vpack.c.b16 %v2355, %v2353
      %v2400 = vpack.c.b16 %v2356, %v2354
      %v2401 = vpack.c.b16 %v2359, %v2357
      %v2402 = vpack.c.b16 %v2360, %v2358
      %v2403 = vpack.c.b16 %v2363, %v2361
      %v2404 = vpack.c.b16 %v2364, %v2362
      %v2405 = vpack.c.b16 %v2367, %v2365
      %v2406 = vpack.c.b16 %v2368, %v2366
      %v2407 = vpack.c.b16 %v2371, %v2369
      %v2408 = vpack.c.b16 %v2372, %v2370
      %v2409 = vpack.c.b16 %v2375, %v2373
      %v2410 = vpack.c.b16 %v2376, %v2374
      %v2411 = vpack.c.b16 %v2379, %v2377
      %v2412 = vpack.c.b16 %v2380, %v2378
      %v2413 = vpack.c.b16 %v2383, %v2381
      %v2414 = vpack.c.b16 %v2384, %v2382
      %v2415 = vpack.c.b16 %v2387, %v2385
      %v2416 = vpack.c.b16 %v2388, %v2386
      %v2417 = vpack.c.b16 %v2391, %v2389
      %v2418 = vpack.c.b16 %v2392, %v2390
      %v2419 = vpack.c.b16 %v2395, %v2393
      %v2420 = vpack.c.b16 %v2396, %v2394
      %v2446 = vsel %vm879, %v2314, 0
      %v2449 = vsel %vm879, %v2316, 0
      %v2452 = vsel %vm879, %v2318, 0
      %v2455 = vsel %vm879, %v2320, 0
      %2457 = vmatprep.subr.bf16.mxu0 %v2412
      %2458 = vmatpush1.bf16.msra.mxu0 %v2411
      %2459 = vmatprep.subr.bf16.mxu0 %v2410
      %2460 = vmatpush1.bf16.msra.mxu0 %v2409
      %2461 = vmatprep.subr.bf16.mxu0 %v2408
      %2462 = vmatpush1.bf16.msra.mxu0 %v2407
      %2463 = vmatprep.subr.bf16.mxu0 %v2406
      %2464 = vmatpush1.bf16.msra.mxu0 %v2405
      %2465 = vmatprep.subr.bf16.mxu0 %v2404
      %2466 = vmatpush1.bf16.msra.mxu0 %v2403
      %2467 = vmatprep.subr.bf16.mxu0 %v2402
      %2468 = vmatpush1.bf16.msra.mxu0 %v2401
      %2469 = vmatprep.subr.bf16.mxu0 %v2400
      %2470 = vmatpush1.bf16.msra.mxu0 %v2399
      %2471 = vmatprep.subr.bf16.mxu0 %v2398
      %2472 = vmatpush1.bf16.msra.mxu0 %v2397
      %2473 = vmatprep.subr.bf16.mxu0 0
      %2474 = vmatpush2.bf16.msra.mxu0 0
      %2475 = vmatprep.subr.bf16.mxu0 0
      %2476 = vmatpush2.bf16.msra.mxu0 0
      %2477 = vmatprep.subr.bf16.mxu0 0
      %2478 = vmatpush2.bf16.msra.mxu0 0
      %2479 = vmatprep.subr.bf16.mxu0 0
      %2480 = vmatpush2.bf16.msra.mxu0 0
      %2481 = vmatprep.subr.bf16.mxu0 %v2420
      %2482 = vmatpush2.bf16.msra.mxu0 %v2419
      %2483 = vmatprep.subr.bf16.mxu0 %v2418
      %2484 = vmatpush2.bf16.msra.mxu0 %v2417
      %2485 = vmatprep.subr.bf16.mxu0 %v2416
      %2486 = vmatpush2.bf16.msra.mxu0 %v2415
      %2487 = vmatprep.subr.bf16.mxu0 %v2414
      %2488 = vmatpush2.bf16.msra.mxu0 %v2413
      %2489 = vmatprep.mubr.bf16.mxu0 %v2446
      %2490 = vmatmul.mubr.bf16.gmra.mxu0 %v2313
      %v2491 = vpop.f32.mrf.mxu0
      %v2492 = vadd.f32 0.0, %v2491
      %v2493 = vpop.f32.mrf.mxu0
      %v2494 = vadd.f32 0.0, %v2493
      %v2495 = vpop.f32.mrf.mxu0
      %v2496 = vadd.f32 0.0, %v2495
      %v2497 = vpop.f32.mrf.mxu0
      %v2498 = vadd.f32 0.0, %v2497
      %2499 = vmatprep.mubr.bf16.mxu0 %v2449
      %2500 = vmatmul.mubr.bf16.gmra.mxu0 %v2315
      %v2501 = vpop.f32.mrf.mxu0
      %v2502 = vadd.f32 0.0, %v2501
      %v2503 = vpop.f32.mrf.mxu0
      %v2504 = vadd.f32 0.0, %v2503
      %v2505 = vpop.f32.mrf.mxu0
      %v2506 = vadd.f32 0.0, %v2505
      %v2507 = vpop.f32.mrf.mxu0
      %v2508 = vadd.f32 0.0, %v2507
      %2509 = vmatprep.mubr.bf16.mxu0 %v2452
      %2510 = vmatmul.mubr.bf16.gmra.mxu0 %v2317
      %v2511 = vpop.f32.mrf.mxu0
      %v2512 = vadd.f32 0.0, %v2511
      %v2513 = vpop.f32.mrf.mxu0
      %v2514 = vadd.f32 0.0, %v2513
      %v2515 = vpop.f32.mrf.mxu0
      %v2516 = vadd.f32 0.0, %v2515
      %v2517 = vpop.f32.mrf.mxu0
      %v2518 = vadd.f32 0.0, %v2517
      %2519 = vmatprep.mubr.bf16.mxu0 %v2455
      %2520 = vmatmul.mubr.bf16.gmra.mxu0 %v2319
      %v2521 = vpop.f32.mrf.mxu0
      %v2522 = vadd.f32 0.0, %v2521
      %v2523 = vpop.f32.mrf.mxu0
      %v2524 = vadd.f32 0.0, %v2523
      %v2525 = vpop.f32.mrf.mxu0
      %v2526 = vpop.f32.mrf.mxu0
      %2527 = vdwg.mxu0
      %v2528 = vadd.f32 %v2271, %v2492
      %v2529 = vadd.f32 %v2272, %v2494
      %v2530 = vadd.f32 %v2273, %v2496
      %v2531 = vadd.f32 %v2274, %v2498
      %v2532 = vadd.f32 %v2275, %v2502
      %v2533 = vadd.f32 %v2276, %v2504
      %v2534 = vadd.f32 %v2277, %v2506
      %v2535 = vadd.f32 %v2278, %v2508
      %v2536 = vadd.f32 %v2279, %v2512
      %v2537 = vadd.f32 %v2280, %v2514
      %v2538 = vadd.f32 %v2281, %v2516
      %v2539 = vadd.f32 %v2282, %v2518
      %v2540 = vadd.f32 %v2283, %v2522
      %v2541 = vadd.f32 %v2284, %v2524
      %s2542 = scalar_lea.vmem %s4, 1344
      %v2543 = vld [vmem:[%s2542] sm:$0xff]
      %v2544 = vld [vmem:[%s2542 + $0x8] sm:$0xff]
      %v2545 = vld [vmem:[%s2542 + $0x10] sm:$0xff]
      %v2546 = vld [vmem:[%s2542 + $0x18] sm:$0xff]
      %v2547 = vld [vmem:[%s2542 + $0x20] sm:$0xff]
      %v2548 = vld [vmem:[%s2542 + $0x28] sm:$0xff]
      %v2549 = vld [vmem:[%s2542 + $0x30] sm:$0xff]
      %v2550 = vld [vmem:[%s2542 + $0x38] sm:$0xff]
      %v2551 = vld [vmem:[%s2542 + $0x40] sm:$0xff]
      %v2552 = vld [vmem:[%s2542 + $0x48] sm:$0xff]
      %v2553 = vld [vmem:[%s2542 + $0x50] sm:$0xff]
      %v2554 = vld [vmem:[%s2542 + $0x58] sm:$0xff]
      %v2555 = vld [vmem:[%s2542 + $0x60] sm:$0xff]
      %v2556 = vld [vmem:[%s2542 + $0x68] sm:$0xff]
      %v2557 = vld [vmem:[%s2542 + $0x70] sm:$0xff]
      %v2558 = vld [vmem:[%s2542 + $0x78] sm:$0xff]
      %v2559 = vld [vmem:[%s2542 + $0x80] sm:$0xff]
      %v2560 = vld [vmem:[%s2542 + $0x88] sm:$0xff]
      %v2561 = vld [vmem:[%s2542 + $0x90] sm:$0xff]
      %v2562 = vld [vmem:[%s2542 + $0x98] sm:$0xff]
      %v2563 = vld [vmem:[%s2542 + $0xa0] sm:$0xff]
      %v2564 = vld [vmem:[%s2542 + $0xa8] sm:$0xff]
      %v2565 = vld [vmem:[%s2542 + $0xb0] sm:$0xff]
      %v2566 = vld [vmem:[%s2542 + $0xb8] sm:$0xff]
      %v2568 = vunpack.c.l.b16 %v427
      %v2569 = vunpack.c.h.b16 %v427
      %v2570 = vpack.c.b16 %v737, %v735
      %v2571 = vpack.c.b16 %v738, %v736
      %v2572 = vpack.c.b16 %v741, %v739
      %v2573 = vpack.c.b16 %v742, %v740
      %v2574 = vpack.c.b16 %v745, %v743
      %v2575 = vpack.c.b16 %v746, %v744
      %v2576 = vpack.c.b16 %v2568, %v2568
      %v2577 = vpack.c.b16 %v2569, %v2569
      %v2606 = vunpack.c.l.b16 %v2543
      %v2607 = vunpack.c.h.b16 %v2543
      %v2608 = vunpack.c.l.b16 %v2544
      %v2609 = vunpack.c.h.b16 %v2544
      %v2610 = vunpack.c.l.b16 %v2545
      %v2611 = vunpack.c.h.b16 %v2545
      %v2612 = vunpack.c.l.b16 %v2546
      %v2613 = vunpack.c.h.b16 %v2546
      %v2614 = vunpack.c.l.b16 %v2547
      %v2615 = vunpack.c.h.b16 %v2547
      %v2616 = vunpack.c.l.b16 %v2548
      %v2617 = vunpack.c.h.b16 %v2548
      %v2618 = vunpack.c.l.b16 %v2549
      %v2619 = vunpack.c.h.b16 %v2549
      %v2620 = vunpack.c.l.b16 %v2550
      %v2621 = vunpack.c.h.b16 %v2550
      %v2622 = vunpack.c.l.b16 %v2551
      %v2623 = vunpack.c.h.b16 %v2551
      %v2624 = vunpack.c.l.b16 %v2552
      %v2625 = vunpack.c.h.b16 %v2552
      %v2626 = vunpack.c.l.b16 %v2553
      %v2627 = vunpack.c.h.b16 %v2553
      %v2628 = vunpack.c.l.b16 %v2554
      %v2629 = vunpack.c.h.b16 %v2554
      %v2630 = vunpack.c.l.b16 %v2555
      %v2631 = vunpack.c.h.b16 %v2555
      %v2632 = vunpack.c.l.b16 %v2556
      %v2633 = vunpack.c.h.b16 %v2556
      %v2634 = vunpack.c.l.b16 %v2557
      %v2635 = vunpack.c.h.b16 %v2557
      %v2636 = vunpack.c.l.b16 %v2558
      %v2637 = vunpack.c.h.b16 %v2558
      %v2638 = vunpack.c.l.b16 %v2559
      %v2639 = vunpack.c.h.b16 %v2559
      %v2640 = vunpack.c.l.b16 %v2560
      %v2641 = vunpack.c.h.b16 %v2560
      %v2642 = vunpack.c.l.b16 %v2561
      %v2643 = vunpack.c.h.b16 %v2561
      %v2644 = vunpack.c.l.b16 %v2562
      %v2645 = vunpack.c.h.b16 %v2562
      %v2646 = vunpack.c.l.b16 %v2563
      %v2647 = vunpack.c.h.b16 %v2563
      %v2648 = vunpack.c.l.b16 %v2564
      %v2649 = vunpack.c.h.b16 %v2564
      %v2650 = vunpack.c.l.b16 %v2565
      %v2651 = vunpack.c.h.b16 %v2565
      %v2652 = vunpack.c.l.b16 %v2566
      %v2653 = vunpack.c.h.b16 %v2566
      %v2654 = vpack.c.b16 %v2608, %v2606
      %v2655 = vpack.c.b16 %v2609, %v2607
      %v2656 = vpack.c.b16 %v2612, %v2610
      %v2657 = vpack.c.b16 %v2613, %v2611
      %v2658 = vpack.c.b16 %v2616, %v2614
      %v2659 = vpack.c.b16 %v2617, %v2615
      %v2660 = vpack.c.b16 %v2620, %v2618
      %v2661 = vpack.c.b16 %v2621, %v2619
      %v2662 = vpack.c.b16 %v2624, %v2622
      %v2663 = vpack.c.b16 %v2625, %v2623
      %v2664 = vpack.c.b16 %v2628, %v2626
      %v2665 = vpack.c.b16 %v2629, %v2627
      %v2666 = vpack.c.b16 %v2632, %v2630
      %v2667 = vpack.c.b16 %v2633, %v2631
      %v2668 = vpack.c.b16 %v2636, %v2634
      %v2669 = vpack.c.b16 %v2637, %v2635
      %v2670 = vpack.c.b16 %v2640, %v2638
      %v2671 = vpack.c.b16 %v2641, %v2639
      %v2672 = vpack.c.b16 %v2644, %v2642
      %v2673 = vpack.c.b16 %v2645, %v2643
      %v2674 = vpack.c.b16 %v2648, %v2646
      %v2675 = vpack.c.b16 %v2649, %v2647
      %v2676 = vpack.c.b16 %v2652, %v2650
      %v2677 = vpack.c.b16 %v2653, %v2651
      %v2703 = vsel %vm879, %v2571, 0
      %v2706 = vsel %vm879, %v2573, 0
      %v2709 = vsel %vm879, %v2575, 0
      %v2712 = vsel %vm879, %v2577, 0
      %2714 = vmatprep.subr.bf16.mxu0 %v2669
      %2715 = vmatpush1.bf16.msra.mxu0 %v2668
      %2716 = vmatprep.subr.bf16.mxu0 %v2667
      %2717 = vmatpush1.bf16.msra.mxu0 %v2666
      %2718 = vmatprep.subr.bf16.mxu0 %v2665
      %2719 = vmatpush1.bf16.msra.mxu0 %v2664
      %2720 = vmatprep.subr.bf16.mxu0 %v2663
      %2721 = vmatpush1.bf16.msra.mxu0 %v2662
      %2722 = vmatprep.subr.bf16.mxu0 %v2661
      %2723 = vmatpush1.bf16.msra.mxu0 %v2660
      %2724 = vmatprep.subr.bf16.mxu0 %v2659
      %2725 = vmatpush1.bf16.msra.mxu0 %v2658
      %2726 = vmatprep.subr.bf16.mxu0 %v2657
      %2727 = vmatpush1.bf16.msra.mxu0 %v2656
      %2728 = vmatprep.subr.bf16.mxu0 %v2655
      %2729 = vmatpush1.bf16.msra.mxu0 %v2654
      %2730 = vmatprep.subr.bf16.mxu0 0
      %2731 = vmatpush2.bf16.msra.mxu0 0
      %2732 = vmatprep.subr.bf16.mxu0 0
      %2733 = vmatpush2.bf16.msra.mxu0 0
      %2734 = vmatprep.subr.bf16.mxu0 0
      %2735 = vmatpush2.bf16.msra.mxu0 0
      %2736 = vmatprep.subr.bf16.mxu0 0
      %2737 = vmatpush2.bf16.msra.mxu0 0
      %2738 = vmatprep.subr.bf16.mxu0 %v2677
      %2739 = vmatpush2.bf16.msra.mxu0 %v2676
      %2740 = vmatprep.subr.bf16.mxu0 %v2675
      %2741 = vmatpush2.bf16.msra.mxu0 %v2674
      %2742 = vmatprep.subr.bf16.mxu0 %v2673
      %2743 = vmatpush2.bf16.msra.mxu0 %v2672
      %2744 = vmatprep.subr.bf16.mxu0 %v2671
      %2745 = vmatpush2.bf16.msra.mxu0 %v2670
      %2746 = vmatprep.mubr.bf16.mxu0 %v2703
      %2747 = vmatmul.mubr.bf16.gmra.mxu0 %v2570
      %v2748 = vpop.f32.mrf.mxu0
      %v2749 = vadd.f32 0.0, %v2748
      %v2750 = vpop.f32.mrf.mxu0
      %v2751 = vadd.f32 0.0, %v2750
      %v2752 = vpop.f32.mrf.mxu0
      %v2753 = vadd.f32 0.0, %v2752
      %v2754 = vpop.f32.mrf.mxu0
      %v2755 = vadd.f32 0.0, %v2754
      %2756 = vmatprep.mubr.bf16.mxu0 %v2706
      %2757 = vmatmul.mubr.bf16.gmra.mxu0 %v2572
      %v2758 = vpop.f32.mrf.mxu0
      %v2759 = vadd.f32 0.0, %v2758
      %v2760 = vpop.f32.mrf.mxu0
      %v2761 = vadd.f32 0.0, %v2760
      %v2762 = vpop.f32.mrf.mxu0
      %v2763 = vadd.f32 0.0, %v2762
      %v2764 = vpop.f32.mrf.mxu0
      %v2765 = vadd.f32 0.0, %v2764
      %2766 = vmatprep.mubr.bf16.mxu0 %v2709
      %2767 = vmatmul.mubr.bf16.gmra.mxu0 %v2574
      %v2768 = vpop.f32.mrf.mxu0
      %v2769 = vadd.f32 0.0, %v2768
      %v2770 = vpop.f32.mrf.mxu0
      %v2771 = vadd.f32 0.0, %v2770
      %v2772 = vpop.f32.mrf.mxu0
      %v2773 = vadd.f32 0.0, %v2772
      %v2774 = vpop.f32.mrf.mxu0
      %v2775 = vadd.f32 0.0, %v2774
      %2776 = vmatprep.mubr.bf16.mxu0 %v2712
      %2777 = vmatmul.mubr.bf16.gmra.mxu0 %v2576
      %v2778 = vpop.f32.mrf.mxu0
      %v2779 = vadd.f32 0.0, %v2778
      %v2780 = vpop.f32.mrf.mxu0
      %v2781 = vadd.f32 0.0, %v2780
      %v2782 = vpop.f32.mrf.mxu0
      %v2783 = vpop.f32.mrf.mxu0
      %2784 = vdwg.mxu0
      %v2785 = vadd.f32 %v2528, %v2749
      %v2786 = vadd.f32 %v2529, %v2751
      %v2787 = vadd.f32 %v2530, %v2753
      %v2788 = vadd.f32 %v2531, %v2755
      %v2789 = vadd.f32 %v2532, %v2759
      %v2790 = vadd.f32 %v2533, %v2761
      %v2791 = vadd.f32 %v2534, %v2763
      %v2792 = vadd.f32 %v2535, %v2765
      %v2793 = vadd.f32 %v2536, %v2769
      %v2794 = vadd.f32 %v2537, %v2771
      %v2795 = vadd.f32 %v2538, %v2773
      %v2796 = vadd.f32 %v2539, %v2775
      %v2797 = vadd.f32 %v2540, %v2779
      %v2798 = vadd.f32 %v2541, %v2781
      %s2799 = scalar_lea.vmem %s4, 1536
      %v2800 = vld [vmem:[%s2799] sm:$0xff]
      %v2801 = vld [vmem:[%s2799 + $0x8] sm:$0xff]
      %v2802 = vld [vmem:[%s2799 + $0x10] sm:$0xff]
      %v2803 = vld [vmem:[%s2799 + $0x18] sm:$0xff]
      %v2804 = vld [vmem:[%s2799 + $0x20] sm:$0xff]
      %v2805 = vld [vmem:[%s2799 + $0x28] sm:$0xff]
      %v2806 = vld [vmem:[%s2799 + $0x30] sm:$0xff]
      %v2807 = vld [vmem:[%s2799 + $0x38] sm:$0xff]
      %v2808 = vld [vmem:[%s2799 + $0x40] sm:$0xff]
      %v2809 = vld [vmem:[%s2799 + $0x48] sm:$0xff]
      %v2810 = vld [vmem:[%s2799 + $0x50] sm:$0xff]
      %v2811 = vld [vmem:[%s2799 + $0x58] sm:$0xff]
      %v2812 = vld [vmem:[%s2799 + $0x60] sm:$0xff]
      %v2813 = vld [vmem:[%s2799 + $0x68] sm:$0xff]
      %v2814 = vld [vmem:[%s2799 + $0x70] sm:$0xff]
      %v2815 = vld [vmem:[%s2799 + $0x78] sm:$0xff]
      %v2816 = vld [vmem:[%s2799 + $0x80] sm:$0xff]
      %v2817 = vld [vmem:[%s2799 + $0x88] sm:$0xff]
      %v2818 = vld [vmem:[%s2799 + $0x90] sm:$0xff]
      %v2819 = vld [vmem:[%s2799 + $0x98] sm:$0xff]
      %v2820 = vld [vmem:[%s2799 + $0xa0] sm:$0xff]
      %v2821 = vld [vmem:[%s2799 + $0xa8] sm:$0xff]
      %v2822 = vld [vmem:[%s2799 + $0xb0] sm:$0xff]
      %v2823 = vld [vmem:[%s2799 + $0xb8] sm:$0xff]
      %v2824 = vunpack.c.l.b16 %v675
      %v2825 = vunpack.c.h.b16 %v675
      %v2826 = vpack.c.b16 %v1228, %v1226
      %v2827 = vpack.c.b16 %v1229, %v1227
      %v2828 = vpack.c.b16 %v1232, %v1230
      %v2829 = vpack.c.b16 %v1233, %v1231
      %v2830 = vpack.c.b16 %v1236, %v1234
      %v2831 = vpack.c.b16 %v1237, %v1235
      %v2832 = vpack.c.b16 %v2824, %v2824
      %v2833 = vpack.c.b16 %v2825, %v2825
      %v2862 = vunpack.c.l.b16 %v2800
      %v2863 = vunpack.c.h.b16 %v2800
      %v2864 = vunpack.c.l.b16 %v2801
      %v2865 = vunpack.c.h.b16 %v2801
      %v2866 = vunpack.c.l.b16 %v2802
      %v2867 = vunpack.c.h.b16 %v2802
      %v2868 = vunpack.c.l.b16 %v2803
      %v2869 = vunpack.c.h.b16 %v2803
      %v2870 = vunpack.c.l.b16 %v2804
      %v2871 = vunpack.c.h.b16 %v2804
      %v2872 = vunpack.c.l.b16 %v2805
      %v2873 = vunpack.c.h.b16 %v2805
      %v2874 = vunpack.c.l.b16 %v2806
      %v2875 = vunpack.c.h.b16 %v2806
      %v2876 = vunpack.c.l.b16 %v2807
      %v2877 = vunpack.c.h.b16 %v2807
      %v2878 = vunpack.c.l.b16 %v2808
      %v2879 = vunpack.c.h.b16 %v2808
      %v2880 = vunpack.c.l.b16 %v2809
      %v2881 = vunpack.c.h.b16 %v2809
      %v2882 = vunpack.c.l.b16 %v2810
      %v2883 = vunpack.c.h.b16 %v2810
      %v2884 = vunpack.c.l.b16 %v2811
      %v2885 = vunpack.c.h.b16 %v2811
      %v2886 = vunpack.c.l.b16 %v2812
      %v2887 = vunpack.c.h.b16 %v2812
      %v2888 = vunpack.c.l.b16 %v2813
      %v2889 = vunpack.c.h.b16 %v2813
      %v2890 = vunpack.c.l.b16 %v2814
      %v2891 = vunpack.c.h.b16 %v2814
      %v2892 = vunpack.c.l.b16 %v2815
      %v2893 = vunpack.c.h.b16 %v2815
      %v2894 = vunpack.c.l.b16 %v2816
      %v2895 = vunpack.c.h.b16 %v2816
      %v2896 = vunpack.c.l.b16 %v2817
      %v2897 = vunpack.c.h.b16 %v2817
      %v2898 = vunpack.c.l.b16 %v2818
      %v2899 = vunpack.c.h.b16 %v2818
      %v2900 = vunpack.c.l.b16 %v2819
      %v2901 = vunpack.c.h.b16 %v2819
      %v2902 = vunpack.c.l.b16 %v2820
      %v2903 = vunpack.c.h.b16 %v2820
      %v2904 = vunpack.c.l.b16 %v2821
      %v2905 = vunpack.c.h.b16 %v2821
      %v2906 = vunpack.c.l.b16 %v2822
      %v2907 = vunpack.c.h.b16 %v2822
      %v2908 = vunpack.c.l.b16 %v2823
      %v2909 = vunpack.c.h.b16 %v2823
      %v2910 = vpack.c.b16 %v2864, %v2862
      %v2911 = vpack.c.b16 %v2865, %v2863
      %v2912 = vpack.c.b16 %v2868, %v2866
      %v2913 = vpack.c.b16 %v2869, %v2867
      %v2914 = vpack.c.b16 %v2872, %v2870
      %v2915 = vpack.c.b16 %v2873, %v2871
      %v2916 = vpack.c.b16 %v2876, %v2874
      %v2917 = vpack.c.b16 %v2877, %v2875
      %v2918 = vpack.c.b16 %v2880, %v2878
      %v2919 = vpack.c.b16 %v2881, %v2879
      %v2920 = vpack.c.b16 %v2884, %v2882
      %v2921 = vpack.c.b16 %v2885, %v2883
      %v2922 = vpack.c.b16 %v2888, %v2886
      %v2923 = vpack.c.b16 %v2889, %v2887
      %v2924 = vpack.c.b16 %v2892, %v2890
      %v2925 = vpack.c.b16 %v2893, %v2891
      %v2926 = vpack.c.b16 %v2896, %v2894
      %v2927 = vpack.c.b16 %v2897, %v2895
      %v2928 = vpack.c.b16 %v2900, %v2898
      %v2929 = vpack.c.b16 %v2901, %v2899
      %v2930 = vpack.c.b16 %v2904, %v2902
      %v2931 = vpack.c.b16 %v2905, %v2903
      %v2932 = vpack.c.b16 %v2908, %v2906
      %v2933 = vpack.c.b16 %v2909, %v2907
      %v2959 = vsel %vm879, %v2827, 0
      %v2962 = vsel %vm879, %v2829, 0
      %v2965 = vsel %vm879, %v2831, 0
      %v2968 = vsel %vm879, %v2833, 0
      %2970 = vmatprep.subr.bf16.mxu0 %v2925
      %2971 = vmatpush1.bf16.msra.mxu0 %v2924
      %2972 = vmatprep.subr.bf16.mxu0 %v2923
      %2973 = vmatpush1.bf16.msra.mxu0 %v2922
      %2974 = vmatprep.subr.bf16.mxu0 %v2921
      %2975 = vmatpush1.bf16.msra.mxu0 %v2920
      %2976 = vmatprep.subr.bf16.mxu0 %v2919
      %2977 = vmatpush1.bf16.msra.mxu0 %v2918
      %2978 = vmatprep.subr.bf16.mxu0 %v2917
      %2979 = vmatpush1.bf16.msra.mxu0 %v2916
      %2980 = vmatprep.subr.bf16.mxu0 %v2915
      %2981 = vmatpush1.bf16.msra.mxu0 %v2914
      %2982 = vmatprep.subr.bf16.mxu0 %v2913
      %2983 = vmatpush1.bf16.msra.mxu0 %v2912
      %2984 = vmatprep.subr.bf16.mxu0 %v2911
      %2985 = vmatpush1.bf16.msra.mxu0 %v2910
      %2986 = vmatprep.subr.bf16.mxu0 0
      %2987 = vmatpush2.bf16.msra.mxu0 0
      %2988 = vmatprep.subr.bf16.mxu0 0
      %2989 = vmatpush2.bf16.msra.mxu0 0
      %2990 = vmatprep.subr.bf16.mxu0 0
      %2991 = vmatpush2.bf16.msra.mxu0 0
      %2992 = vmatprep.subr.bf16.mxu0 0
      %2993 = vmatpush2.bf16.msra.mxu0 0
      %2994 = vmatprep.subr.bf16.mxu0 %v2933
      %2995 = vmatpush2.bf16.msra.mxu0 %v2932
      %2996 = vmatprep.subr.bf16.mxu0 %v2931
      %2997 = vmatpush2.bf16.msra.mxu0 %v2930
      %2998 = vmatprep.subr.bf16.mxu0 %v2929
      %2999 = vmatpush2.bf16.msra.mxu0 %v2928
      %3000 = vmatprep.subr.bf16.mxu0 %v2927
      %3001 = vmatpush2.bf16.msra.mxu0 %v2926
      %3002 = vmatprep.mubr.bf16.mxu0 %v2959
      %3003 = vmatmul.mubr.bf16.gmra.mxu0 %v2826
      %v3004 = vpop.f32.mrf.mxu0
      %v3005 = vadd.f32 0.0, %v3004
      %v3006 = vpop.f32.mrf.mxu0
      %v3007 = vadd.f32 0.0, %v3006
      %v3008 = vpop.f32.mrf.mxu0
      %v3009 = vadd.f32 0.0, %v3008
      %v3010 = vpop.f32.mrf.mxu0
      %v3011 = vadd.f32 0.0, %v3010
      %3012 = vmatprep.mubr.bf16.mxu0 %v2962
      %3013 = vmatmul.mubr.bf16.gmra.mxu0 %v2828
      %v3014 = vpop.f32.mrf.mxu0
      %v3015 = vadd.f32 0.0, %v3014
      %v3016 = vpop.f32.mrf.mxu0
      %v3017 = vadd.f32 0.0, %v3016
      %v3018 = vpop.f32.mrf.mxu0
      %v3019 = vadd.f32 0.0, %v3018
      %v3020 = vpop.f32.mrf.mxu0
      %v3021 = vadd.f32 0.0, %v3020
      %3022 = vmatprep.mubr.bf16.mxu0 %v2965
      %3023 = vmatmul.mubr.bf16.gmra.mxu0 %v2830
      %v3024 = vpop.f32.mrf.mxu0
      %v3025 = vadd.f32 0.0, %v3024
      %v3026 = vpop.f32.mrf.mxu0
      %v3027 = vadd.f32 0.0, %v3026
      %v3028 = vpop.f32.mrf.mxu0
      %v3029 = vadd.f32 0.0, %v3028
      %v3030 = vpop.f32.mrf.mxu0
      %v3031 = vadd.f32 0.0, %v3030
      %3032 = vmatprep.mubr.bf16.mxu0 %v2968
      %3033 = vmatmul.mubr.bf16.gmra.mxu0 %v2832
      %v3034 = vpop.f32.mrf.mxu0
      %v3035 = vadd.f32 0.0, %v3034
      %v3036 = vpop.f32.mrf.mxu0
      %v3037 = vadd.f32 0.0, %v3036
      %v3038 = vpop.f32.mrf.mxu0
      %v3039 = vpop.f32.mrf.mxu0
      %3040 = vdwg.mxu0
      %v3041 = vadd.f32 %v2785, %v3005
      %v3042 = vadd.f32 %v2786, %v3007
      %v3043 = vadd.f32 %v2787, %v3009
      %v3044 = vadd.f32 %v2788, %v3011
      %v3045 = vadd.f32 %v2789, %v3015
      %v3046 = vadd.f32 %v2790, %v3017
      %v3047 = vadd.f32 %v2791, %v3019
      %v3048 = vadd.f32 %v2792, %v3021
      %v3049 = vadd.f32 %v2793, %v3025
      %v3050 = vadd.f32 %v2794, %v3027
      %v3051 = vadd.f32 %v2795, %v3029
      %v3052 = vadd.f32 %v2796, %v3031
      %v3053 = vadd.f32 %v2797, %v3035
      %v3054 = vadd.f32 %v2798, %v3037
      %v3055 = vmax.bf16 %v404, %v420
      %v3056 = vmax.bf16 %v406, %v421
      %v3057 = vmax.bf16 %v408, %v422
      %v3058 = vmax.bf16 %v410, %v423
      %v3059 = vmax.bf16 %v412, %v424
      %v3060 = vmax.bf16 %v414, %v425
      %v3061 = vmax.bf16 %v416, %v426
      %v3062 = vmax.bf16 %v3055, %v465
      %v3063 = vmax.bf16 %v3056, %v479
      %v3064 = vmax.bf16 %v3057, %v493
      %v3065 = vmax.bf16 %v3058, %v507
      %v3066 = vmax.bf16 %v3059, %v521
      %v3067 = vmax.bf16 %v3060, %v535
      %v3068 = vmax.bf16 %v3061, %v549
      %v3069 = vmax.bf16 %v3062, %v428
      %v3070 = vmax.bf16 %v3063, %v430
      %v3071 = vmax.bf16 %v3064, %v432
      %v3072 = vmax.bf16 %v3065, %v434
      %v3073 = vmax.bf16 %v3066, %v436
      %v3074 = vmax.bf16 %v3067, %v438
      %v3075 = vmax.bf16 %v3068, %v440
      %v3076 = vmax.bf16 %v3069, %v442
      %v3077 = vmax.bf16 %v3070, %v443
      %v3078 = vmax.bf16 %v3071, %v444
      %v3079 = vmax.bf16 %v3072, %v445
      %v3080 = vmax.bf16 %v3073, %v446
      %v3081 = vmax.bf16 %v3074, %v447
      %v3082 = vmax.bf16 %v3075, %v448
      %v3083 = vmax.bf16 %v3076, %v570
      %v3084 = vmax.bf16 %v3077, %v584
      %v3085 = vmax.bf16 %v3078, %v598
      %v3086 = vmax.bf16 %v3079, %v612
      %v3087 = vmax.bf16 %v3080, %v626
      %v3088 = vmax.bf16 %v3081, %v640
      %v3089 = vmax.bf16 %v3082, %v654
      %v3090 = vmax.bf16 %v3083, %v406
      %v3091 = vmax.bf16 %v3084, %v408
      %v3092 = vmax.bf16 %v3085, %v410
      %v3093 = vmax.bf16 %v3086, %v412
      %v3094 = vmax.bf16 %v3087, %v414
      %v3095 = vmax.bf16 %v3088, %v416
      %v3096 = vmax.bf16 %v3089, %v418
      %v3097 = vmax.bf16 %v3090, %v421
      %v3098 = vmax.bf16 %v3091, %v422
      %v3099 = vmax.bf16 %v3092, %v423
      %v3100 = vmax.bf16 %v3093, %v424
      %v3101 = vmax.bf16 %v3094, %v425
      %v3102 = vmax.bf16 %v3095, %v426
      %v3103 = vmax.bf16 %v3096, %v427
      %v3104 = vmax.bf16 %v3097, %v479
      %v3105 = vmax.bf16 %v3098, %v493
      %v3106 = vmax.bf16 %v3099, %v507
      %v3107 = vmax.bf16 %v3100, %v521
      %v3108 = vmax.bf16 %v3101, %v535
      %v3109 = vmax.bf16 %v3102, %v549
      %v3110 = vmax.bf16 %v3103, %v675
      %v3111 = vld [vmem:[%s5] ss:$2 sm:$0x3]
      %v3113 = vlaneseq
      %v3114 = vshrl.u32 %v3113, 7
      %v3115 = vsub.s32 0, %v3114
      %v3116 = vrot.slane %v3111, %v3115
      %v3117 = vlaneseq
      %v3118 = vshrl.u32 %v3117, 7
      %v3119 = vsub.s32 1, %v3118
      %v3120 = vrot.slane %v3111, %v3119
      %v3123 = vmul.f32 %v3041, %v3116
      %v3124 = vmul.f32 %v3042, %v3120
      %v3125 = vmul.f32 %v3043, %v3116
      %v3126 = vmul.f32 %v3044, %v3120
      %v3127 = vmul.f32 %v3045, %v3116
      %v3128 = vmul.f32 %v3046, %v3120
      %v3129 = vmul.f32 %v3047, %v3116
      %v3130 = vmul.f32 %v3048, %v3120
      %v3131 = vmul.f32 %v3049, %v3116
      %v3132 = vmul.f32 %v3050, %v3120
      %v3133 = vmul.f32 %v3051, %v3116
      %v3134 = vmul.f32 %v3052, %v3120
      %v3135 = vmul.f32 %v3053, %v3116
      %v3136 = vmul.f32 %v3054, %v3120
      %s3137 = scalar_lea.vmem %s5, 1
      %v3138 = vld [vmem:[%s3137] ss:$2 sm:$0x3]
      %v3140 = vlaneseq
      %v3141 = vshrl.u32 %v3140, 7
      %v3142 = vsub.s32 0, %v3141
      %v3143 = vrot.slane %v3138, %v3142
      %v3144 = vlaneseq
      %v3145 = vshrl.u32 %v3144, 7
      %v3146 = vsub.s32 1, %v3145
      %v3147 = vrot.slane %v3138, %v3146
      %v3150 = vadd.f32 %v3123, %v3143
      %v3151 = vadd.f32 %v3124, %v3147
      %v3152 = vadd.f32 %v3125, %v3143
      %v3153 = vadd.f32 %v3126, %v3147
      %v3154 = vadd.f32 %v3127, %v3143
      %v3155 = vadd.f32 %v3128, %v3147
      %v3156 = vadd.f32 %v3129, %v3143
      %v3157 = vadd.f32 %v3130, %v3147
      %v3158 = vadd.f32 %v3131, %v3143
      %v3159 = vadd.f32 %v3132, %v3147
      %v3160 = vadd.f32 %v3133, %v3143
      %v3161 = vadd.f32 %v3134, %v3147
      %v3162 = vadd.f32 %v3135, %v3143
      %v3163 = vadd.f32 %v3136, %v3147
      %v3164 = vmax.f32 %v3150, 0.0
      %v3165 = vmax.f32 %v3151, 0.0
      %v3166 = vmax.f32 %v3152, 0.0
      %v3167 = vmax.f32 %v3153, 0.0
      %v3168 = vmax.f32 %v3154, 0.0
      %v3169 = vmax.f32 %v3155, 0.0
      %v3170 = vmax.f32 %v3156, 0.0
      %v3171 = vmax.f32 %v3157, 0.0
      %v3172 = vmax.f32 %v3158, 0.0
      %v3173 = vmax.f32 %v3159, 0.0
      %v3174 = vmax.f32 %v3160, 0.0
      %v3175 = vmax.f32 %v3161, 0.0
      %v3176 = vmax.f32 %v3162, 0.0
      %v3177 = vmax.f32 %v3163, 0.0
      %v3178 = vpack.c.bf16 %v3166, %v3164
      %v3179 = vpack.c.bf16 %v3167, %v3165
      %v3180 = vpack.c.bf16 %v3170, %v3168
      %v3181 = vpack.c.bf16 %v3171, %v3169
      %v3182 = vpack.c.bf16 %v3174, %v3172
      %v3183 = vpack.c.bf16 %v3175, %v3173
      %v3184 = vpack.c.bf16 %v3176, %v3176
      %v3185 = vpack.c.bf16 %v3177, %v3177
      %v3193 = vunpack.c.l.b16 %v3104
      %v3194 = vunpack.c.h.b16 %v3104
      %v3195 = vunpack.c.l.b16 %v3105
      %v3196 = vunpack.c.h.b16 %v3105
      %v3197 = vunpack.c.l.b16 %v3106
      %v3198 = vunpack.c.h.b16 %v3106
      %v3199 = vunpack.c.l.b16 %v3107
      %v3200 = vunpack.c.h.b16 %v3107
      %v3201 = vunpack.c.l.b16 %v3108
      %v3202 = vunpack.c.h.b16 %v3108
      %v3203 = vunpack.c.l.b16 %v3109
      %v3204 = vunpack.c.h.b16 %v3109
      %v3205 = vunpack.c.l.b16 %v3110
      %v3206 = vunpack.c.h.b16 %v3110
      %v3207 = vpack.c.b16 %v3195, %v3193
      %v3208 = vpack.c.b16 %v3196, %v3194
      %v3209 = vpack.c.b16 %v3199, %v3197
      %v3210 = vpack.c.b16 %v3200, %v3198
      %v3211 = vpack.c.b16 %v3203, %v3201
      %v3212 = vpack.c.b16 %v3204, %v3202
      %v3213 = vpack.c.b16 %v3205, %v3205
      %v3214 = vpack.c.b16 %v3206, %v3206
      %3215 = vrot.lane.b32.xlu0 %v3207, 64
      %v3216 = vpop.permute.xlu0 %3215
      %3217 = vrot.lane.b32.xlu0 %v3208, 64
      %v3218 = vpop.permute.xlu0 %3217
      %3219 = vrot.lane.b32.xlu0 %v3209, 64
      %v3220 = vpop.permute.xlu0 %3219
      %3221 = vrot.lane.b32.xlu0 %v3210, 64
      %v3222 = vpop.permute.xlu0 %3221
      %3223 = vrot.lane.b32.xlu0 %v3211, 64
      %v3224 = vpop.permute.xlu0 %3223
      %3225 = vrot.lane.b32.xlu0 %v3212, 64
      %v3226 = vpop.permute.xlu0 %3225
      %3227 = vrot.lane.b32.xlu0 %v3213, 64
      %v3228 = vpop.permute.xlu0 %3227
      %3229 = vrot.lane.b32.xlu0 %v3214, 64
      %v3230 = vpop.permute.xlu0 %3229
      %vm3231 = vcmask 523264
      %v3232 = vsel %vm3231, %v3216, %v3218
      %v3233 = vsel %vm3231, %v3220, %v3222
      %v3234 = vsel %vm3231, %v3224, %v3226
      %v3235 = vsel %vm3231, %v3228, %v3230
      %v3238 = vsel %vm879, %v3179, %v3216
      %v3241 = vsel %vm879, %v3181, %v3220
      %v3244 = vsel %vm879, %v3183, %v3224
      %v3247 = vsel %vm879, %v3185, %v3228
      %v3256 = vunpack.c.l.b16 %v3178
      %v3257 = vunpack.c.l.b16 %v3238
      %v3258 = vunpack.c.l.b16 %v3232
      %v3259 = vunpack.c.h.b16 %v3178
      %v3260 = vunpack.c.h.b16 %v3238
      %v3261 = vunpack.c.h.b16 %v3232
      %v3262 = vunpack.c.l.b16 %v3180
      %v3263 = vunpack.c.l.b16 %v3241
      %v3264 = vunpack.c.l.b16 %v3233
      %v3265 = vunpack.c.h.b16 %v3180
      %v3266 = vunpack.c.h.b16 %v3241
      %v3267 = vunpack.c.h.b16 %v3233
      %v3268 = vunpack.c.l.b16 %v3182
      %v3269 = vunpack.c.l.b16 %v3244
      %v3270 = vunpack.c.l.b16 %v3234
      %v3271 = vunpack.c.h.b16 %v3182
      %v3272 = vunpack.c.h.b16 %v3244
      %v3273 = vunpack.c.h.b16 %v3234
      %v3274 = vunpack.c.l.b16 %v3184
      %v3275 = vunpack.c.l.b16 %v3247
      %v3276 = vunpack.c.l.b16 %v3235
      %v3277 = vpack.c.b16 %v3257, %v3256
      %v3278 = vpack.c.b16 %v3258, %v3258
      %v3279 = vpack.c.b16 %v3260, %v3259
      %v3280 = vpack.c.b16 %v3261, %v3261
      %v3281 = vpack.c.b16 %v3263, %v3262
      %v3282 = vpack.c.b16 %v3264, %v3264
      %v3283 = vpack.c.b16 %v3266, %v3265
      %v3284 = vpack.c.b16 %v3267, %v3267
      %v3285 = vpack.c.b16 %v3269, %v3268
      %v3286 = vpack.c.b16 %v3270, %v3270
      %v3287 = vpack.c.b16 %v3272, %v3271
      %v3288 = vpack.c.b16 %v3273, %v3273
      %v3289 = vpack.c.b16 %v3275, %v3274
      %v3290 = vpack.c.b16 %v3276, %v3276
      %3305 = vst [vmem:[%s401] sm:$0xff] %v3277
      %3306 = vst [vmem:[%s401 + $0x8] sm:$0xf] %v3278
      %3307 = vst [vmem:[%s401 + $0xc] sm:$0xff] %v3279
      %3308 = vst [vmem:[%s401 + $0x14] sm:$0xf] %v3280
      %3309 = vst [vmem:[%s401 + $0x18] sm:$0xff] %v3281
      %3310 = vst [vmem:[%s401 + $0x20] sm:$0xf] %v3282
      %3311 = vst [vmem:[%s401 + $0x24] sm:$0xff] %v3283
      %3312 = vst [vmem:[%s401 + $0x2c] sm:$0xf] %v3284
      %3313 = vst [vmem:[%s401 + $0x30] sm:$0xff] %v3285
      %3314 = vst [vmem:[%s401 + $0x38] sm:$0xf] %v3286
      %3315 = vst [vmem:[%s401 + $0x3c] sm:$0xff] %v3287
      %3316 = vst [vmem:[%s401 + $0x44] sm:$0xf] %v3288
      %3317 = vst [vmem:[%s401 + $0x48] sm:$0xff] %v3289
      %3318 = vst [vmem:[%s401 + $0x50] sm:$0xf] %v3290
      %s3319 = smul.u32 7, %s22
      %p3320 = scmp.lt.s32.totalorder %s21, 1
      %s3321 = scalar_select %p3320, %s21, 1
      %p3322 = scmp.lt.s32.totalorder %s3319, 13
      %s3323 = scalar_select %p3322, %s3319, 13
      %s3324 = smul.addr %s3323, 3
      %s3325 = smul.addr %s3321, 42
      %s3326 = sadd.s32 %s3324, %s3325
      %s3327 = smul.addr %s3326, 4
      %s3328 = scalar_lea.vmem %s6, %s3327
      // Predicated region
      $region45: #{mixed_5a.1} parent=43 // pred_check
        %p3329 = pneg %p207
      $region46: #{mixed_5a.1} parent=43 // pred_check_branch
        %3331 = sbr.rel (%p3329) target = $region48
      $region47: #{mixed_5a.1} parent=43 // pred_region
        %s3332 = smul.u32 7, %s22
      $region48: #{mixed_5a.1} parent=43 // pred_fallthru
        _
    $region44: #{mixed_5a.1} parent=5 // pred_fallthru
      _
    %p3333 = scmp.le.s32.totalorder 2, %s12
    // Predicated region
    $region49: #{mixed_5a.1} parent=5 // pred_check
      %p3334 = pneg %p3333
    $region50: #{mixed_5a.1} parent=5 // pred_check_branch
      %3336 = sbr.rel (%p3334) target = $region52
    $region51: #{mixed_5a.1} parent=5 // pred_region
      %s3337 = ssub.s32 %s12, 2
      // Predicated region
      $region53: #{mixed_5a.1} parent=51 // pred_check
        %p3338 = pneg %p213
      $region54: #{mixed_5a.1} parent=51 // pred_check_branch
        %3340 = sbr.rel (%p3338) target = $region56
      $region55: #{mixed_5a.1} parent=51 // pred_region
        %s3341 = smul.u32 7, %s24
        %p3342 = scmp.lt.s32.totalorder %s23, 1
        %s3343 = scalar_select %p3342, %s23, 1
        %p3344 = scmp.lt.s32.totalorder %s3341, 13
        %s3345 = scalar_select %p3344, %s3341, 13
        %s3346 = smul.addr %s3345, 3
        %s3347 = smul.addr %s3343, 42
        %s3348 = sadd.s32 %s3346, %s3347
        %s3349 = smul.addr %s3348, 4
        %s3350 = scalar_lea.vmem %s6, %s3349
      $region56: #{mixed_5a.1} parent=51 // pred_fallthru
        _
    $region52: #{mixed_5a.1} parent=5 // pred_fallthru
      _
  $region6: #{mixed_5a.1} parent=0 // loop_footer
    %s16 = sadd.s32 1, %s12
  $region7: #{mixed_5a.1} parent=0 // loop_footer_branch
    %11 = sbr.rel target = $region3
  $region8: #{mixed_5a.1} parent=0 // loop_exit
    _

</llo_original>
